<compile_context>
chip_gen: v7x
topology: tpu7x:2x2x1
jax: 0.10.0
libtpu: 0.0.40
codegen_flags: <defaults>
</compile_context>

<pallas_src>
import functools

import jax
import jax.numpy as jnp
from jax import lax
from jax.experimental import pallas as pl
from jax.experimental.pallas import tpu as pltpu


def _mha_kernel(x_ref, wqkv_ref, bqkv_ref, wo_ref, bo_ref, o_ref, *, n_heads):
    bb, T, D = x_ref.shape
    H = n_heads
    dh = D // H
    G = H * bb            # flattened (head, batch) group dim for batched dots

    x = x_ref[...]        # (bb, T, D) f32

    # ---- head-batched fused QKV projection ---------------------------------
    # Activations / weights are replicated only along NEW LEADING (major) dims
    # and the two leading dims are then merged; neither op touches the
    # (sublane, lane) pair, so there are no lane-offset relayouts.  Every dot
    # below is a rank-3 dot_general with one leading batch dim (the
    # well-supported Mosaic pattern).
    xg = jnp.broadcast_to(x[None], (H, bb, T, D)).reshape(G, T, D)
    wg = jnp.broadcast_to(wqkv_ref[...][:, None], (H, bb, D, 3 * dh)).reshape(G, D, 3 * dh)
    bg = jnp.broadcast_to(bqkv_ref[...][:, None], (H, bb, 1, 3 * dh)).reshape(G, 1, 3 * dh)

    qkv = lax.dot_general(xg, wg, (((2,), (1,)), ((0,), (0,))),
                          preferred_element_type=jnp.float32) + bg      # (G, T, 3*dh)

    q = qkv[:, :, :dh]              # `scale` pre-folded into the q weight/bias
    k = qkv[:, :, dh:2 * dh]
    v = qkv[:, :, 2 * dh:]

    # ---- scaled dot-product attention, exact stabilized softmax ------------
    s = lax.dot_general(q, k, (((2,), (2,)), ((0,), (0,))),
                        preferred_element_type=jnp.float32)             # (G, T, T)
    s = s - jnp.max(s, axis=-1, keepdims=True)
    p = jnp.exp(s)
    p = p / jnp.sum(p, axis=-1, keepdims=True)     # exact divide (no approx recip)

    y = lax.dot_general(p, v, (((2,), (1,)), ((0,), (0,))),
                        preferred_element_type=jnp.float32)             # (G, T, dh)

    # ---- output projection with the head merge folded in -------------------
    # out[b] = sum_h y[h, b] @ Wo^T[h*dh:(h+1)*dh, :]  — same FLOPs as the
    # merged (rows, D) @ (D, D) matmul, but no (T, H) transpose, no per-head
    # lane-narrow masked stores and no VMEM scratch round trip.
    wog = jnp.broadcast_to(wo_ref[...][:, None], (H, bb, dh, D)).reshape(G, dh, D)
    og = lax.dot_general(y, wog, (((2,), (1,)), ((0,), (0,))),
                         preferred_element_type=jnp.float32)            # (G, T, D)
    out = jnp.sum(og.reshape(H, bb, T, D), axis=0) + bo_ref[...]        # (bb, T, D)
    o_ref[...] = out.astype(o_ref.dtype)


def multi_head_attention(x, params, *, n_heads, scale):
    """x: (B, T, D) float32. params: dict of PyTorch-layout weights/biases."""
    B, T, D = x.shape
    assert D % n_heads == 0
    H, dh = n_heads, D // n_heads

    # ---- host-side weight prep (one-time layout plumbing) ------------------
    def head_cols(w_t):                       # (D_in, D_out) -> (H, D_in, dh)
        return w_t.reshape(D, H, dh).transpose(1, 0, 2)

    wqkv = jnp.concatenate([head_cols(params["wq"].T * scale),   # scale folded into q
                            head_cols(params["wk"].T),
                            head_cols(params["wv"].T)], axis=2)           # (H, D, 3*dh)
    bqkv = jnp.concatenate([(params["bq"] * scale).reshape(H, dh),
                            jnp.zeros((H, dh), x.dtype),                  # k_proj: bias=False
                            params["bv"].reshape(H, dh)], axis=1).reshape(H, 1, 3 * dh)
    wo_heads = params["wo"].T.reshape(H, dh, D)                           # (H, dh, D)
    bo = params["bo"].reshape(1, 1, D)
    # TODO(synk): for scaled-up D/T, cast x and the fused weights to bfloat16
    # here (keep preferred_element_type=f32 in the kernel; softmax stays f32).

    # ---- rows-per-step: size/VMEM heuristic, no device-kind sniffing -------
    try:
        info = pltpu.get_tpu_info()
        vmem_cap = int(getattr(info, "vmem_capacity_bytes", 64 << 20))
    except Exception:
        vmem_cap = 64 << 20                      # conservative (v7x has 64 MiB)
    budget = max(vmem_cap // 8, 4 << 20)

    def step_bytes(bb):
        g = H * bb
        io = 2 * 2 * bb * T * D                              # double-buffered x / out
        w = H * D * 3 * dh + H * dh * D + H * 3 * dh + D     # resident weights
        tmp = g * (T * D + T * 3 * dh + T * T + T * D)       # xg, qkv, scores, og
        return 4 * (io + w + tmp)

    bb = B
    while bb > 1 and step_bytes(bb) > budget:
        bb -= 1
    while B % bb:                                            # keep the grid exact
        bb -= 1
    grid = (B // bb,)

    # Only request extra scoped VMEM when the block footprint actually needs it.
    vmem_limit = None
    if step_bytes(bb) > (12 << 20):
        vmem_limit = int(min(2 * step_bytes(bb), vmem_cap))

    kernel = functools.partial(_mha_kernel, n_heads=n_heads)

    return pl.pallas_call(
        kernel,
        out_shape=jax.ShapeDtypeStruct((B, T, D), x.dtype),
        grid_spec=pltpu.PrefetchScalarGridSpec(
            num_scalar_prefetch=0,
            grid=grid,
            in_specs=[
                pl.BlockSpec((bb, T, D), lambda i: (i, 0, 0)),         # x block
                pl.BlockSpec((H, D, 3 * dh), lambda i: (0, 0, 0)),     # Wqkv (head-major)
                pl.BlockSpec((H, 1, 3 * dh), lambda i: (0, 0, 0)),     # fused bias
                pl.BlockSpec((H, dh, D), lambda i: (0, 0, 0)),         # Wo^T head chunks
                pl.BlockSpec((1, 1, D), lambda i: (0, 0, 0)),          # bo
            ],
            out_specs=pl.BlockSpec((bb, T, D), lambda i: (i, 0, 0)),
        ),
        compiler_params=pltpu.CompilerParams(
            # Single grid step for small problems (no per-step / per-core
            # overhead); batch-tiled "parallel" grid only when VMEM forces bb<B.
            dimension_semantics=(("arbitrary",) if grid[0] == 1 else ("parallel",)),
            vmem_limit_bytes=vmem_limit,
        ),
    )(x, wqkv, bqkv, wo_heads, bo)


def _reference(x, params, *, n_heads, scale):
    """Pure-JAX reference mirroring the PyTorch forward (eval, flash, no mask)."""
    B, T, D = x.shape
    dh = D // n_heads
    with jax.default_matmul_precision("highest"):
        q = x @ params["wq"].T + params["bq"]
        k = x @ params["wk"].T
        v = x @ params["wv"].T + params["bv"]

        def split(a):
            return a.reshape(B, T, n_heads, dh).transpose(0, 2, 1, 3)  # (B, H, T, dh)

        q, k, v = split(q), split(k), split(v)
        s = jnp.einsum("bhqd,bhkd->bhqk", q, k) * scale
        p = jax.nn.softmax(s, axis=-1)
        y = jnp.einsum("bhqk,bhkd->bhqd", p, v)
        y = y.transpose(0, 2, 1, 3).reshape(B, T, D)
        return y @ params["wo"].T + params["bo"]


if __name__ == "__main__":
    # Module config: n_heads=4, d_model=32, block_size=8, scale=1/sqrt(d_head)
    n_heads = 4
    d_model = 32
    B, T = 2, 8
    scale = 1.0 / float(jnp.sqrt(d_model // n_heads))

    key = jax.random.PRNGKey(0)
    ks = jax.random.split(key, 8)
    init = lambda k, shape: (jax.random.normal(k, shape, jnp.float32) * 0.05)

    params = {
        "wq": init(ks[0], (d_model, d_model)),
        "wk": init(ks[1], (d_model, d_model)),
        "wv": init(ks[2], (d_model, d_model)),
        "wo": init(ks[3], (d_model, d_model)),
        "bq": init(ks[4], (d_model,)),
        "bv": init(ks[5], (d_model,)),
        "bo": init(ks[6], (d_model,)),
    }
    x = jax.random.normal(ks[7], (B, T, d_model), jnp.float32)

    out = multi_head_attention(x, params, n_heads=n_heads, scale=scale)
    out = jax.block_until_ready(out)

    ref = _reference(x, params, n_heads=n_heads, scale=scale)
    assert out.shape == (B, T, d_model)
    # Exact softmax divide (no approximate reciprocal) -> tight f32 tolerance.
    assert jnp.allclose(out, ref, atol=2e-5, rtol=2e-5), "mismatch vs reference"

    print("KERNEL_OK")
</pallas_src>

<mosaic_0001>
module attributes {stable_mosaic.version = 11 : i64} {
  func.func @_mha_kernel(%arg0: i32, %arg1: memref<2x8x32xf32, #tpu.memory_space<vmem>>, %arg2: memref<4x32x24xf32, #tpu.memory_space<vmem>>, %arg3: memref<4x1x24xf32, #tpu.memory_space<vmem>>, %arg4: memref<4x8x32xf32, #tpu.memory_space<vmem>>, %arg5: memref<1x1x32xf32, #tpu.memory_space<vmem>>, %arg6: memref<2x8x32xf32, #tpu.memory_space<vmem>>) attributes {dimension_semantics = [#tpu.dimension_semantics<arbitrary>], iteration_bounds = array<i64: 1>, scalar_prefetch = 0 : i64, scratch_operands = 0 : i64, tpu.core_type = #tpu.core_type<tc>, window_params = [{transform_indices = @transform_0, window_bounds = array<i64: 2, 8, 32>}, {pipeline_mode = #tpu.pipeline_mode<synchronous>, transform_indices = @transform_1, window_bounds = array<i64: 4, 32, 24>}, {pipeline_mode = #tpu.pipeline_mode<synchronous>, transform_indices = @transform_2, window_bounds = array<i64: 4, 1, 24>}, {pipeline_mode = #tpu.pipeline_mode<synchronous>, transform_indices = @transform_3, window_bounds = array<i64: 4, 8, 32>}, {pipeline_mode = #tpu.pipeline_mode<synchronous>, transform_indices = @transform_4, window_bounds = array<i64: 1, 1, 32>}, {transform_indices = @transform_5, window_bounds = array<i64: 2, 8, 32>}]} {
    %c0 = arith.constant 0 : index
    %c0_0 = arith.constant 0 : index
    %c0_1 = arith.constant 0 : index
    %0 = vector.load %arg1[%c0, %c0_0, %c0_1] : memref<2x8x32xf32, #tpu.memory_space<vmem>>, vector<2x8x32xf32>
    %1 = vector.shape_cast %0 : vector<2x8x32xf32> to vector<1x2x8x32xf32>
    %2 = vector.shape_cast %1 : vector<1x2x8x32xf32> to vector<1x2x8x32xf32>
    %3 = vector.broadcast %2 : vector<1x2x8x32xf32> to vector<4x2x8x32xf32>
    %4 = vector.shape_cast %3 : vector<4x2x8x32xf32> to vector<8x8x32xf32>
    %c0_2 = arith.constant 0 : index
    %c0_3 = arith.constant 0 : index
    %c0_4 = arith.constant 0 : index
    %5 = vector.load %arg2[%c0_2, %c0_3, %c0_4] : memref<4x32x24xf32, #tpu.memory_space<vmem>>, vector<4x32x24xf32>
    %6 = vector.shape_cast %5 : vector<4x32x24xf32> to vector<4x1x32x24xf32>
    %7 = vector.shape_cast %6 : vector<4x1x32x24xf32> to vector<4x1x32x24xf32>
    %8 = vector.broadcast %7 : vector<4x1x32x24xf32> to vector<4x2x32x24xf32>
    %9 = vector.shape_cast %8 : vector<4x2x32x24xf32> to vector<8x32x24xf32>
    %c0_5 = arith.constant 0 : index
    %c0_6 = arith.constant 0 : index
    %c0_7 = arith.constant 0 : index
    %10 = vector.load %arg3[%c0_5, %c0_6, %c0_7] : memref<4x1x24xf32, #tpu.memory_space<vmem>>, vector<4x1x24xf32>
    %11 = vector.shape_cast %10 : vector<4x1x24xf32> to vector<4x1x1x24xf32>
    %12 = vector.shape_cast %11 : vector<4x1x1x24xf32> to vector<4x1x1x24xf32>
    %13 = vector.broadcast %12 : vector<4x1x1x24xf32> to vector<4x2x1x24xf32>
    %14 = vector.shape_cast %13 : vector<4x2x1x24xf32> to vector<8x1x24xf32>
    %cst = arith.constant dense<0.000000e+00> : vector<8x8x24xf32>
    %15 = tpu.matmul %4, %9, %cst {dimension_numbers = #tpu.dot_dimension_numbers<[2], [1], [1], [2], [0, 0, 0, 1, 1, 2], [0], [0]>} : vector<8x8x32xf32>, vector<8x32x24xf32>, vector<8x8x24xf32> -> vector<8x8x24xf32>
    %16 = vector.broadcast %14 : vector<8x1x24xf32> to vector<8x8x24xf32>
    %17 = arith.addf %15, %16 : vector<8x8x24xf32>
    %18 = vector.extract_strided_slice %17 {offsets = [0, 0, 0], sizes = [8, 8, 8], strides = [1, 1, 1]} : vector<8x8x24xf32> to vector<8x8x8xf32>
    %19 = vector.extract_strided_slice %17 {offsets = [0, 0, 8], sizes = [8, 8, 8], strides = [1, 1, 1]} : vector<8x8x24xf32> to vector<8x8x8xf32>
    %20 = vector.extract_strided_slice %17 {offsets = [0, 0, 16], sizes = [8, 8, 8], strides = [1, 1, 1]} : vector<8x8x24xf32> to vector<8x8x8xf32>
    %cst_8 = arith.constant dense<0.000000e+00> : vector<8x8x8xf32>
    %21 = tpu.matmul %18, %19, %cst_8 {dimension_numbers = #tpu.dot_dimension_numbers<[2], [2], [1], [1], [0, 0, 0, 1, 1, 1], [0], [0]>} : vector<8x8x8xf32>, vector<8x8x8xf32>, vector<8x8x8xf32> -> vector<8x8x8xf32>
    %cst_9 = arith.constant dense<0xFF800000> : vector<8x8xf32>
    %22 = vector.multi_reduction <maximumf>, %21, %cst_9 [2] : vector<8x8x8xf32> to vector<8x8xf32>
    %23 = vector.shape_cast %22 : vector<8x8xf32> to vector<8x8x1xf32>
    %24 = vector.broadcast %23 : vector<8x8x1xf32> to vector<8x8x8xf32>
    %25 = arith.subf %21, %24 : vector<8x8x8xf32>
    %26 = math.exp %25 : vector<8x8x8xf32>
    %cst_10 = arith.constant dense<0.000000e+00> : vector<8x8xf32>
    %27 = vector.multi_reduction <add>, %26, %cst_10 [2] : vector<8x8x8xf32> to vector<8x8xf32>
    %28 = vector.shape_cast %27 : vector<8x8xf32> to vector<8x8x1xf32>
    %29 = vector.broadcast %28 : vector<8x8x1xf32> to vector<8x8x8xf32>
    %30 = arith.divf %26, %29 : vector<8x8x8xf32>
    %cst_11 = arith.constant dense<0.000000e+00> : vector<8x8x8xf32>
    %31 = tpu.matmul %30, %20, %cst_11 {dimension_numbers = #tpu.dot_dimension_numbers<[2], [1], [1], [2], [0, 0, 0, 1, 1, 2], [0], [0]>} : vector<8x8x8xf32>, vector<8x8x8xf32>, vector<8x8x8xf32> -> vector<8x8x8xf32>
    %c0_12 = arith.constant 0 : index
    %c0_13 = arith.constant 0 : index
    %c0_14 = arith.constant 0 : index
    %32 = vector.load %arg4[%c0_12, %c0_13, %c0_14] : memref<4x8x32xf32, #tpu.memory_space<vmem>>, vector<4x8x32xf32>
    %33 = vector.shape_cast %32 : vector<4x8x32xf32> to vector<4x1x8x32xf32>
    %34 = vector.shape_cast %33 : vector<4x1x8x32xf32> to vector<4x1x8x32xf32>
    %35 = vector.broadcast %34 : vector<4x1x8x32xf32> to vector<4x2x8x32xf32>
    %36 = vector.shape_cast %35 : vector<4x2x8x32xf32> to vector<8x8x32xf32>
    %cst_15 = arith.constant dense<0.000000e+00> : vector<8x8x32xf32>
    %37 = tpu.matmul %31, %36, %cst_15 {dimension_numbers = #tpu.dot_dimension_numbers<[2], [1], [1], [2], [0, 0, 0, 1, 1, 2], [0], [0]>} : vector<8x8x8xf32>, vector<8x8x32xf32>, vector<8x8x32xf32> -> vector<8x8x32xf32>
    %38 = vector.shape_cast %37 : vector<8x8x32xf32> to vector<4x2x8x32xf32>
    %cst_16 = arith.constant dense<0.000000e+00> : vector<2x8x32xf32>
    %39 = vector.multi_reduction <add>, %38, %cst_16 [0] : vector<4x2x8x32xf32> to vector<2x8x32xf32>
    %c0_17 = arith.constant 0 : index
    %c0_18 = arith.constant 0 : index
    %c0_19 = arith.constant 0 : index
    %40 = vector.load %arg5[%c0_17, %c0_18, %c0_19] : memref<1x1x32xf32, #tpu.memory_space<vmem>>, vector<1x1x32xf32>
    %41 = vector.broadcast %40 : vector<1x1x32xf32> to vector<2x8x32xf32>
    %42 = arith.addf %39, %41 : vector<2x8x32xf32>
    %c0_20 = arith.constant 0 : index
    %c0_21 = arith.constant 0 : index
    %c0_22 = arith.constant 0 : index
    %43 = vector.load %arg6[%c0_20, %c0_21, %c0_22] : memref<2x8x32xf32, #tpu.memory_space<vmem>>, vector<2x8x32xf32>
    tpu.vector_store %arg6[%c0_20, %c0_21, %c0_22], %42 {strides = array<i32>} : memref<2x8x32xf32, #tpu.memory_space<vmem>>, vector<2x8x32xf32>,
    return
  }
  func.func @transform_0(%arg0: i32) -> (i32, i32, i32) {
    %c0_i32 = arith.constant 0 : i32
    %c0_i32_0 = arith.constant 0 : i32
    %c0_i32_1 = arith.constant 0 : i32
    return %arg0, %c0_i32, %c0_i32_0 : i32, i32, i32
  }
  func.func @transform_1(%arg0: i32) -> (i32, i32, i32) {
    %c0_i32 = arith.constant 0 : i32
    %c0_i32_0 = arith.constant 0 : i32
    %c0_i32_1 = arith.constant 0 : i32
    %c0_i32_2 = arith.constant 0 : i32
    return %c0_i32, %c0_i32_0, %c0_i32_1 : i32, i32, i32
  }
  func.func @transform_2(%arg0: i32) -> (i32, i32, i32) {
    %c0_i32 = arith.constant 0 : i32
    %c0_i32_0 = arith.constant 0 : i32
    %c0_i32_1 = arith.constant 0 : i32
    %c0_i32_2 = arith.constant 0 : i32
    return %c0_i32, %c0_i32_0, %c0_i32_1 : i32, i32, i32
  }
  func.func @transform_3(%arg0: i32) -> (i32, i32, i32) {
    %c0_i32 = arith.constant 0 : i32
    %c0_i32_0 = arith.constant 0 : i32
    %c0_i32_1 = arith.constant 0 : i32
    %c0_i32_2 = arith.constant 0 : i32
    return %c0_i32, %c0_i32_0, %c0_i32_1 : i32, i32, i32
  }
  func.func @transform_4(%arg0: i32) -> (i32, i32, i32) {
    %c0_i32 = arith.constant 0 : i32
    %c0_i32_0 = arith.constant 0 : i32
    %c0_i32_1 = arith.constant 0 : i32
    %c0_i32_2 = arith.constant 0 : i32
    return %c0_i32, %c0_i32_0, %c0_i32_1 : i32, i32, i32
  }
  func.func @transform_5(%arg0: i32) -> (i32, i32, i32) {
    %c0_i32 = arith.constant 0 : i32
    %c0_i32_0 = arith.constant 0 : i32
    %c0_i32_1 = arith.constant 0 : i32
    return %arg0, %c0_i32, %c0_i32_0 : i32, i32, i32
  }
}

</mosaic_0001>

<llo_original>
// kernel: tpu_custom_call.1
$region0: #{tpu_custom_call.1}
  #allocation0 [shape = 'u32[]', space=smem, size = 0x4, offset = 0x4, fixed_abs, tag = 'smem constant byte address 0x4 - core index']
  #allocation1 [shape = 'u32[144,128]{1,0:T(1,128)}', space=vmem, size = 0x12000, scoped, tag = 'internal scratch']
  %s0 = inlined_call_operand.vmem [shape: f32[2,8,32], index: 0, kind: input, shape index: {}]
  %s1 = inlined_call_operand.vmem [shape: f32[4,32,24], index: 1, kind: input, shape index: {}]
  %s2 = inlined_call_operand.vmem [shape: f32[4,1,24], index: 2, kind: input, shape index: {}]
  %s3 = inlined_call_operand.vmem [shape: f32[4,8,32], index: 3, kind: input, shape index: {}]
  %s4 = inlined_call_operand.vmem [shape: f32[1,1,32], index: 4, kind: input, shape index: {}]
  %s5 = inlined_call_operand.hbm [shape: f32[2,8,32], index: 5, kind: output, shape index: {}]
  %s6 = sld [smem:[#allocation0]]
  $region30: #{tpu_custom_call.1} parent=0
    _
  %s8 = ssub.s32 1, %s6
  %s9 = scalar_select 0, %s8, %s6
  $region1: #{tpu_custom_call.1} parent=0
    #allocation2 [shape = 'u8[8192]{0}', space=vmem, size = 0x2000, scoped, tag = 'output window, operand 0, single buffered']
    #allocation3 [shape = 's32[1]{0}', space=sflag, size = 0x4, scoped, tag = 'scoped memory for tpu_custom_call.1']
    %10 = vsyncpa [#allocation3], 0
    // Predicated region
    $region2: #{tpu_custom_call.1} parent=1 // pred_check
      _
    $region3: #{tpu_custom_call.1} parent=1 // pred_check_branch
      %12 = sbr.rel (0) target = $region5
    $region4: #{tpu_custom_call.1} parent=1 // pred_region
      _
    $region5: #{tpu_custom_call.1} parent=1 // pred_fallthru
      _
    // Predicated region
    $region6: #{tpu_custom_call.1} parent=1 // pred_check
      _
    $region7: #{tpu_custom_call.1} parent=1 // pred_check_branch
      %14 = sbr.rel (0) target = $region9
    $region8: #{tpu_custom_call.1} parent=1 // pred_region
      _
    $region9: #{tpu_custom_call.1} parent=1 // pred_fallthru
      _
    // Predicated region
    $region10: #{tpu_custom_call.1} parent=1 // pred_check
      _
    $region11: #{tpu_custom_call.1} parent=1 // pred_check_branch
      %16 = sbr.rel (0) target = $region13
    $region12: #{tpu_custom_call.1} parent=1 // pred_region
      _
    $region13: #{tpu_custom_call.1} parent=1 // pred_fallthru
      _
    // Predicated region
    $region14: #{tpu_custom_call.1} parent=1 // pred_check
      _
    $region15: #{tpu_custom_call.1} parent=1 // pred_check_branch
      %18 = sbr.rel (0) target = $region17
    $region16: #{tpu_custom_call.1} parent=1 // pred_region
      _
    $region17: #{tpu_custom_call.1} parent=1 // pred_fallthru
      _
    // Predicated region
    $region18: #{tpu_custom_call.1} parent=1 // pred_check
      _
    $region19: #{tpu_custom_call.1} parent=1 // pred_check_branch
      %20 = sbr.rel (0) target = $region21
    $region20: #{tpu_custom_call.1} parent=1 // pred_region
      _
    $region21: #{tpu_custom_call.1} parent=1 // pred_fallthru
      _
    %v21 = vld [vmem:[%s0] sm:$0xff]
    %v22 = vld [vmem:[%s0 + $0x8] sm:$0xff]
    %v23 = vld [vmem:[%s1] sm:$0xff]
    %v24 = vld [vmem:[%s1 + $0x8] sm:$0xff]
    %v25 = vld [vmem:[%s1 + $0x10] sm:$0xff]
    %v26 = vld [vmem:[%s1 + $0x18] sm:$0xff]
    %v27 = vld [vmem:[%s1 + $0x20] sm:$0xff]
    %v28 = vld [vmem:[%s1 + $0x28] sm:$0xff]
    %v29 = vld [vmem:[%s1 + $0x30] sm:$0xff]
    %v30 = vld [vmem:[%s1 + $0x38] sm:$0xff]
    %v31 = vld [vmem:[%s1 + $0x40] sm:$0xff]
    %v32 = vld [vmem:[%s1 + $0x48] sm:$0xff]
    %v33 = vld [vmem:[%s1 + $0x50] sm:$0xff]
    %v34 = vld [vmem:[%s1 + $0x58] sm:$0xff]
    %v35 = vld [vmem:[%s1 + $0x60] sm:$0xff]
    %v36 = vld [vmem:[%s1 + $0x68] sm:$0xff]
    %v37 = vld [vmem:[%s1 + $0x70] sm:$0xff]
    %v38 = vld [vmem:[%s1 + $0x78] sm:$0xff]
    %v39 = vld [vmem:[%s2] sm:$0x1]
    %v40 = vld [vmem:[%s2 + $0x1] sm:$0x1]
    %v41 = vld [vmem:[%s2 + $0x2] sm:$0x1]
    %v42 = vld [vmem:[%s2 + $0x3] sm:$0x1]
    %v47 = vlaneseq
    %v48 = vshrl.u32 %v47, 7
    %v49 = vsub.s32 0, %v48
    %v50 = vrot.slane %v39, %v49
    %v51 = vlaneseq
    %v52 = vshrl.u32 %v51, 7
    %v53 = vsub.s32 0, %v52
    %v54 = vrot.slane %v40, %v53
    %v55 = vlaneseq
    %v56 = vshrl.u32 %v55, 7
    %v57 = vsub.s32 0, %v56
    %v58 = vrot.slane %v41, %v57
    %v59 = vlaneseq
    %v60 = vshrl.u32 %v59, 7
    %v61 = vsub.s32 0, %v60
    %v62 = vrot.slane %v42, %v61
    %vm67 = vcmask 261120
    %v69 = vsel %vm67, %v21, 0
    %71 = vmatprep.subr.mxu0 0.0
    %72 = vmatpush1.msra.mxu0 %v23
    %73 = vmatprep.subr.mxu0 0.0
    %74 = vmatpush1.msra.mxu0 %v24
    %75 = vmatprep.subr.mxu0 0.0
    %76 = vmatpush1.msra.mxu0 %v25
    %77 = vmatprep.subr.mxu0 0.0
    %78 = vmatpush1.msra.mxu0 %v26
    %79 = vmatprep.subr.mxu0 0.0
    %80 = vmatpush1.msra.mxu0 0.0
    %81 = vmatprep.subr.mxu0 0.0
    %82 = vmatpush1.msra.mxu0 0.0
    %83 = vmatprep.subr.mxu0 0.0
    %84 = vmatpush1.msra.mxu0 0.0
    %85 = vmatprep.subr.mxu0 0.0
    %86 = vmatpush1.msra.mxu0 0.0
    %87 = vmatprep.subr.mxu0 0.0
    %88 = vmatpush1.msra.mxu0 0.0
    %89 = vmatprep.subr.mxu0 0.0
    %90 = vmatpush1.msra.mxu0 0.0
    %91 = vmatprep.subr.mxu0 0.0
    %92 = vmatpush1.msra.mxu0 0.0
    %93 = vmatprep.subr.mxu0 0.0
    %94 = vmatpush1.msra.mxu0 0.0
    %95 = vmatprep.subr.mxu0 0.0
    %96 = vmatpush1.msra.mxu0 0.0
    %97 = vmatprep.subr.mxu0 0.0
    %98 = vmatpush1.msra.mxu0 0.0
    %99 = vmatprep.subr.mxu0 0.0
    %100 = vmatpush1.msra.mxu0 0.0
    %101 = vmatprep.subr.mxu0 0.0
    %102 = vmatpush1.msra.mxu0 0.0
    %103 = vmatprep.subr.mxu0 0.0
    %104 = vmatpush1.msra.mxu0 0.0
    %105 = vmatprep.subr.mxu0 0.0
    %106 = vmatpush1.msra.mxu0 0.0
    %107 = vmatprep.subr.mxu0 0.0
    %108 = vmatpush1.msra.mxu0 0.0
    %109 = vmatprep.subr.mxu0 0.0
    %110 = vmatpush1.msra.mxu0 0.0
    %111 = vmatprep.subr.mxu0 0.0
    %112 = vmatpush1.msra.mxu0 0.0
    %113 = vmatprep.subr.mxu0 0.0
    %114 = vmatpush1.msra.mxu0 0.0
    %115 = vmatprep.subr.mxu0 0.0
    %116 = vmatpush1.msra.mxu0 0.0
    %117 = vmatprep.subr.mxu0 0.0
    %118 = vmatpush1.msra.mxu0 0.0
    %119 = vmatprep.subr.mxu0 0.0
    %120 = vmatpush1.msra.mxu0 0.0
    %121 = vmatprep.subr.mxu0 0.0
    %122 = vmatpush1.msra.mxu0 0.0
    %123 = vmatprep.subr.mxu0 0.0
    %124 = vmatpush1.msra.mxu0 0.0
    %125 = vmatprep.subr.mxu0 0.0
    %126 = vmatpush1.msra.mxu0 0.0
    %127 = vmatprep.subr.mxu0 0.0
    %128 = vmatpush1.msra.mxu0 0.0
    %129 = vmatprep.subr.mxu0 0.0
    %130 = vmatpush1.msra.mxu0 0.0
    %131 = vmatprep.subr.mxu0 0.0
    %132 = vmatpush1.msra.mxu0 0.0
    %133 = vmatprep.subr.mxu0 0.0
    %134 = vmatpush1.msra.mxu0 0.0
    %135 = vmatprep.mubr.f32.mxu0 0.0
    %136 = vmatmul.mubr.f32.gmra.mrb[0].mxu0 %v69
    %v137 = vpop.f32.mrb[0].mxu0
    %v138 = vadd.f32 %v50, %v137
    %v139 = vpop.f32.mrb[0].mxu0
    %140 = vdwg.mxu0
    %v142 = vsel %vm67, %v22, 0
    %144 = vmatprep.subr.mxu0 0.0
    %145 = vmatpush1.msra.mxu0 %v23
    %146 = vmatprep.subr.mxu0 0.0
    %147 = vmatpush1.msra.mxu0 %v24
    %148 = vmatprep.subr.mxu0 0.0
    %149 = vmatpush1.msra.mxu0 %v25
    %150 = vmatprep.subr.mxu0 0.0
    %151 = vmatpush1.msra.mxu0 %v26
    %152 = vmatprep.subr.mxu0 0.0
    %153 = vmatpush1.msra.mxu0 0.0
    %154 = vmatprep.subr.mxu0 0.0
    %155 = vmatpush1.msra.mxu0 0.0
    %156 = vmatprep.subr.mxu0 0.0
    %157 = vmatpush1.msra.mxu0 0.0
    %158 = vmatprep.subr.mxu0 0.0
    %159 = vmatpush1.msra.mxu0 0.0
    %160 = vmatprep.subr.mxu0 0.0
    %161 = vmatpush1.msra.mxu0 0.0
    %162 = vmatprep.subr.mxu0 0.0
    %163 = vmatpush1.msra.mxu0 0.0
    %164 = vmatprep.subr.mxu0 0.0
    %165 = vmatpush1.msra.mxu0 0.0
    %166 = vmatprep.subr.mxu0 0.0
    %167 = vmatpush1.msra.mxu0 0.0
    %168 = vmatprep.subr.mxu0 0.0
    %169 = vmatpush1.msra.mxu0 0.0
    %170 = vmatprep.subr.mxu0 0.0
    %171 = vmatpush1.msra.mxu0 0.0
    %172 = vmatprep.subr.mxu0 0.0
    %173 = vmatpush1.msra.mxu0 0.0
    %174 = vmatprep.subr.mxu0 0.0
    %175 = vmatpush1.msra.mxu0 0.0
    %176 = vmatprep.subr.mxu0 0.0
    %177 = vmatpush1.msra.mxu0 0.0
    %178 = vmatprep.subr.mxu0 0.0
    %179 = vmatpush1.msra.mxu0 0.0
    %180 = vmatprep.subr.mxu0 0.0
    %181 = vmatpush1.msra.mxu0 0.0
    %182 = vmatprep.subr.mxu0 0.0
    %183 = vmatpush1.msra.mxu0 0.0
    %184 = vmatprep.subr.mxu0 0.0
    %185 = vmatpush1.msra.mxu0 0.0
    %186 = vmatprep.subr.mxu0 0.0
    %187 = vmatpush1.msra.mxu0 0.0
    %188 = vmatprep.subr.mxu0 0.0
    %189 = vmatpush1.msra.mxu0 0.0
    %190 = vmatprep.subr.mxu0 0.0
    %191 = vmatpush1.msra.mxu0 0.0
    %192 = vmatprep.subr.mxu0 0.0
    %193 = vmatpush1.msra.mxu0 0.0
    %194 = vmatprep.subr.mxu0 0.0
    %195 = vmatpush1.msra.mxu0 0.0
    %196 = vmatprep.subr.mxu0 0.0
    %197 = vmatpush1.msra.mxu0 0.0
    %198 = vmatprep.subr.mxu0 0.0
    %199 = vmatpush1.msra.mxu0 0.0
    %200 = vmatprep.subr.mxu0 0.0
    %201 = vmatpush1.msra.mxu0 0.0
    %202 = vmatprep.subr.mxu0 0.0
    %203 = vmatpush1.msra.mxu0 0.0
    %204 = vmatprep.subr.mxu0 0.0
    %205 = vmatpush1.msra.mxu0 0.0
    %206 = vmatprep.subr.mxu0 0.0
    %207 = vmatpush1.msra.mxu0 0.0
    %208 = vmatprep.mubr.f32.mxu0 0.0
    %209 = vmatmul.mubr.f32.gmra.mrb[0].mxu0 %v142
    %v210 = vpop.f32.mrb[0].mxu0
    %v211 = vadd.f32 %v50, %v210
    %v212 = vpop.f32.mrb[0].mxu0
    %213 = vdwg.mxu0
    %214 = vmatprep.subr.mxu0 0.0
    %215 = vmatpush1.msra.mxu0 %v27
    %216 = vmatprep.subr.mxu0 0.0
    %217 = vmatpush1.msra.mxu0 %v28
    %218 = vmatprep.subr.mxu0 0.0
    %219 = vmatpush1.msra.mxu0 %v29
    %220 = vmatprep.subr.mxu0 0.0
    %221 = vmatpush1.msra.mxu0 %v30
    %222 = vmatprep.subr.mxu0 0.0
    %223 = vmatpush1.msra.mxu0 0.0
    %224 = vmatprep.subr.mxu0 0.0
    %225 = vmatpush1.msra.mxu0 0.0
    %226 = vmatprep.subr.mxu0 0.0
    %227 = vmatpush1.msra.mxu0 0.0
    %228 = vmatprep.subr.mxu0 0.0
    %229 = vmatpush1.msra.mxu0 0.0
    %230 = vmatprep.subr.mxu0 0.0
    %231 = vmatpush1.msra.mxu0 0.0
    %232 = vmatprep.subr.mxu0 0.0
    %233 = vmatpush1.msra.mxu0 0.0
    %234 = vmatprep.subr.mxu0 0.0
    %235 = vmatpush1.msra.mxu0 0.0
    %236 = vmatprep.subr.mxu0 0.0
    %237 = vmatpush1.msra.mxu0 0.0
    %238 = vmatprep.subr.mxu0 0.0
    %239 = vmatpush1.msra.mxu0 0.0
    %240 = vmatprep.subr.mxu0 0.0
    %241 = vmatpush1.msra.mxu0 0.0
    %242 = vmatprep.subr.mxu0 0.0
    %243 = vmatpush1.msra.mxu0 0.0
    %244 = vmatprep.subr.mxu0 0.0
    %245 = vmatpush1.msra.mxu0 0.0
    %246 = vmatprep.subr.mxu0 0.0
    %247 = vmatpush1.msra.mxu0 0.0
    %248 = vmatprep.subr.mxu0 0.0
    %249 = vmatpush1.msra.mxu0 0.0
    %250 = vmatprep.subr.mxu0 0.0
    %251 = vmatpush1.msra.mxu0 0.0
    %252 = vmatprep.subr.mxu0 0.0
    %253 = vmatpush1.msra.mxu0 0.0
    %254 = vmatprep.subr.mxu0 0.0
    %255 = vmatpush1.msra.mxu0 0.0
    %256 = vmatprep.subr.mxu0 0.0
    %257 = vmatpush1.msra.mxu0 0.0
    %258 = vmatprep.subr.mxu0 0.0
    %259 = vmatpush1.msra.mxu0 0.0
    %260 = vmatprep.subr.mxu0 0.0
    %261 = vmatpush1.msra.mxu0 0.0
    %262 = vmatprep.subr.mxu0 0.0
    %263 = vmatpush1.msra.mxu0 0.0
    %264 = vmatprep.subr.mxu0 0.0
    %265 = vmatpush1.msra.mxu0 0.0
    %266 = vmatprep.subr.mxu0 0.0
    %267 = vmatpush1.msra.mxu0 0.0
    %268 = vmatprep.subr.mxu0 0.0
    %269 = vmatpush1.msra.mxu0 0.0
    %270 = vmatprep.subr.mxu0 0.0
    %271 = vmatpush1.msra.mxu0 0.0
    %272 = vmatprep.subr.mxu0 0.0
    %273 = vmatpush1.msra.mxu0 0.0
    %274 = vmatprep.subr.mxu0 0.0
    %275 = vmatpush1.msra.mxu0 0.0
    %276 = vmatprep.subr.mxu0 0.0
    %277 = vmatpush1.msra.mxu0 0.0
    %278 = vmatprep.mubr.f32.mxu0 0.0
    %279 = vmatmul.mubr.f32.gmra.mrb[0].mxu0 %v69
    %v280 = vpop.f32.mrb[0].mxu0
    %v281 = vadd.f32 %v54, %v280
    %v282 = vpop.f32.mrb[0].mxu0
    %283 = vdwg.mxu0
    %284 = vmatprep.subr.mxu0 0.0
    %285 = vmatpush1.msra.mxu0 %v27
    %286 = vmatprep.subr.mxu0 0.0
    %287 = vmatpush1.msra.mxu0 %v28
    %288 = vmatprep.subr.mxu0 0.0
    %289 = vmatpush1.msra.mxu0 %v29
    %290 = vmatprep.subr.mxu0 0.0
    %291 = vmatpush1.msra.mxu0 %v30
    %292 = vmatprep.subr.mxu0 0.0
    %293 = vmatpush1.msra.mxu0 0.0
    %294 = vmatprep.subr.mxu0 0.0
    %295 = vmatpush1.msra.mxu0 0.0
    %296 = vmatprep.subr.mxu0 0.0
    %297 = vmatpush1.msra.mxu0 0.0
    %298 = vmatprep.subr.mxu0 0.0
    %299 = vmatpush1.msra.mxu0 0.0
    %300 = vmatprep.subr.mxu0 0.0
    %301 = vmatpush1.msra.mxu0 0.0
    %302 = vmatprep.subr.mxu0 0.0
    %303 = vmatpush1.msra.mxu0 0.0
    %304 = vmatprep.subr.mxu0 0.0
    %305 = vmatpush1.msra.mxu0 0.0
    %306 = vmatprep.subr.mxu0 0.0
    %307 = vmatpush1.msra.mxu0 0.0
    %308 = vmatprep.subr.mxu0 0.0
    %309 = vmatpush1.msra.mxu0 0.0
    %310 = vmatprep.subr.mxu0 0.0
    %311 = vmatpush1.msra.mxu0 0.0
    %312 = vmatprep.subr.mxu0 0.0
    %313 = vmatpush1.msra.mxu0 0.0
    %314 = vmatprep.subr.mxu0 0.0
    %315 = vmatpush1.msra.mxu0 0.0
    %316 = vmatprep.subr.mxu0 0.0
    %317 = vmatpush1.msra.mxu0 0.0
    %318 = vmatprep.subr.mxu0 0.0
    %319 = vmatpush1.msra.mxu0 0.0
    %320 = vmatprep.subr.mxu0 0.0
    %321 = vmatpush1.msra.mxu0 0.0
    %322 = vmatprep.subr.mxu0 0.0
    %323 = vmatpush1.msra.mxu0 0.0
    %324 = vmatprep.subr.mxu0 0.0
    %325 = vmatpush1.msra.mxu0 0.0
    %326 = vmatprep.subr.mxu0 0.0
    %327 = vmatpush1.msra.mxu0 0.0
    %328 = vmatprep.subr.mxu0 0.0
    %329 = vmatpush1.msra.mxu0 0.0
    %330 = vmatprep.subr.mxu0 0.0
    %331 = vmatpush1.msra.mxu0 0.0
    %332 = vmatprep.subr.mxu0 0.0
    %333 = vmatpush1.msra.mxu0 0.0
    %334 = vmatprep.subr.mxu0 0.0
    %335 = vmatpush1.msra.mxu0 0.0
    %336 = vmatprep.subr.mxu0 0.0
    %337 = vmatpush1.msra.mxu0 0.0
    %338 = vmatprep.subr.mxu0 0.0
    %339 = vmatpush1.msra.mxu0 0.0
    %340 = vmatprep.subr.mxu0 0.0
    %341 = vmatpush1.msra.mxu0 0.0
    %342 = vmatprep.subr.mxu0 0.0
    %343 = vmatpush1.msra.mxu0 0.0
    %344 = vmatprep.subr.mxu0 0.0
    %345 = vmatpush1.msra.mxu0 0.0
    %346 = vmatprep.subr.mxu0 0.0
    %347 = vmatpush1.msra.mxu0 0.0
    %348 = vmatprep.mubr.f32.mxu0 0.0
    %349 = vmatmul.mubr.f32.gmra.mrb[0].mxu0 %v142
    %v350 = vpop.f32.mrb[0].mxu0
    %v351 = vadd.f32 %v54, %v350
    %v352 = vpop.f32.mrb[0].mxu0
    %353 = vdwg.mxu0
    %354 = vmatprep.subr.mxu0 0.0
    %355 = vmatpush1.msra.mxu0 %v31
    %356 = vmatprep.subr.mxu0 0.0
    %357 = vmatpush1.msra.mxu0 %v32
    %358 = vmatprep.subr.mxu0 0.0
    %359 = vmatpush1.msra.mxu0 %v33
    %360 = vmatprep.subr.mxu0 0.0
    %361 = vmatpush1.msra.mxu0 %v34
    %362 = vmatprep.subr.mxu0 0.0
    %363 = vmatpush1.msra.mxu0 0.0
    %364 = vmatprep.subr.mxu0 0.0
    %365 = vmatpush1.msra.mxu0 0.0
    %366 = vmatprep.subr.mxu0 0.0
    %367 = vmatpush1.msra.mxu0 0.0
    %368 = vmatprep.subr.mxu0 0.0
    %369 = vmatpush1.msra.mxu0 0.0
    %370 = vmatprep.subr.mxu0 0.0
    %371 = vmatpush1.msra.mxu0 0.0
    %372 = vmatprep.subr.mxu0 0.0
    %373 = vmatpush1.msra.mxu0 0.0
    %374 = vmatprep.subr.mxu0 0.0
    %375 = vmatpush1.msra.mxu0 0.0
    %376 = vmatprep.subr.mxu0 0.0
    %377 = vmatpush1.msra.mxu0 0.0
    %378 = vmatprep.subr.mxu0 0.0
    %379 = vmatpush1.msra.mxu0 0.0
    %380 = vmatprep.subr.mxu0 0.0
    %381 = vmatpush1.msra.mxu0 0.0
    %382 = vmatprep.subr.mxu0 0.0
    %383 = vmatpush1.msra.mxu0 0.0
    %384 = vmatprep.subr.mxu0 0.0
    %385 = vmatpush1.msra.mxu0 0.0
    %386 = vmatprep.subr.mxu0 0.0
    %387 = vmatpush1.msra.mxu0 0.0
    %388 = vmatprep.subr.mxu0 0.0
    %389 = vmatpush1.msra.mxu0 0.0
    %390 = vmatprep.subr.mxu0 0.0
    %391 = vmatpush1.msra.mxu0 0.0
    %392 = vmatprep.subr.mxu0 0.0
    %393 = vmatpush1.msra.mxu0 0.0
    %394 = vmatprep.subr.mxu0 0.0
    %395 = vmatpush1.msra.mxu0 0.0
    %396 = vmatprep.subr.mxu0 0.0
    %397 = vmatpush1.msra.mxu0 0.0
    %398 = vmatprep.subr.mxu0 0.0
    %399 = vmatpush1.msra.mxu0 0.0
    %400 = vmatprep.subr.mxu0 0.0
    %401 = vmatpush1.msra.mxu0 0.0
    %402 = vmatprep.subr.mxu0 0.0
    %403 = vmatpush1.msra.mxu0 0.0
    %404 = vmatprep.subr.mxu0 0.0
    %405 = vmatpush1.msra.mxu0 0.0
    %406 = vmatprep.subr.mxu0 0.0
    %407 = vmatpush1.msra.mxu0 0.0
    %408 = vmatprep.subr.mxu0 0.0
    %409 = vmatpush1.msra.mxu0 0.0
    %410 = vmatprep.subr.mxu0 0.0
    %411 = vmatpush1.msra.mxu0 0.0
    %412 = vmatprep.subr.mxu0 0.0
    %413 = vmatpush1.msra.mxu0 0.0
    %414 = vmatprep.subr.mxu0 0.0
    %415 = vmatpush1.msra.mxu0 0.0
    %416 = vmatprep.subr.mxu0 0.0
    %417 = vmatpush1.msra.mxu0 0.0
    %418 = vmatprep.mubr.f32.mxu0 0.0
    %419 = vmatmul.mubr.f32.gmra.mrb[0].mxu0 %v69
    %v420 = vpop.f32.mrb[0].mxu0
    %v421 = vadd.f32 %v58, %v420
    %v422 = vpop.f32.mrb[0].mxu0
    %423 = vdwg.mxu0
    %424 = vmatprep.subr.mxu0 0.0
    %425 = vmatpush1.msra.mxu0 %v31
    %426 = vmatprep.subr.mxu0 0.0
    %427 = vmatpush1.msra.mxu0 %v32
    %428 = vmatprep.subr.mxu0 0.0
    %429 = vmatpush1.msra.mxu0 %v33
    %430 = vmatprep.subr.mxu0 0.0
    %431 = vmatpush1.msra.mxu0 %v34
    %432 = vmatprep.subr.mxu0 0.0
    %433 = vmatpush1.msra.mxu0 0.0
    %434 = vmatprep.subr.mxu0 0.0
    %435 = vmatpush1.msra.mxu0 0.0
    %436 = vmatprep.subr.mxu0 0.0
    %437 = vmatpush1.msra.mxu0 0.0
    %438 = vmatprep.subr.mxu0 0.0
    %439 = vmatpush1.msra.mxu0 0.0
    %440 = vmatprep.subr.mxu0 0.0
    %441 = vmatpush1.msra.mxu0 0.0
    %442 = vmatprep.subr.mxu0 0.0
    %443 = vmatpush1.msra.mxu0 0.0
    %444 = vmatprep.subr.mxu0 0.0
    %445 = vmatpush1.msra.mxu0 0.0
    %446 = vmatprep.subr.mxu0 0.0
    %447 = vmatpush1.msra.mxu0 0.0
    %448 = vmatprep.subr.mxu0 0.0
    %449 = vmatpush1.msra.mxu0 0.0
    %450 = vmatprep.subr.mxu0 0.0
    %451 = vmatpush1.msra.mxu0 0.0
    %452 = vmatprep.subr.mxu0 0.0
    %453 = vmatpush1.msra.mxu0 0.0
    %454 = vmatprep.subr.mxu0 0.0
    %455 = vmatpush1.msra.mxu0 0.0
    %456 = vmatprep.subr.mxu0 0.0
    %457 = vmatpush1.msra.mxu0 0.0
    %458 = vmatprep.subr.mxu0 0.0
    %459 = vmatpush1.msra.mxu0 0.0
    %460 = vmatprep.subr.mxu0 0.0
    %461 = vmatpush1.msra.mxu0 0.0
    %462 = vmatprep.subr.mxu0 0.0
    %463 = vmatpush1.msra.mxu0 0.0
    %464 = vmatprep.subr.mxu0 0.0
    %465 = vmatpush1.msra.mxu0 0.0
    %466 = vmatprep.subr.mxu0 0.0
    %467 = vmatpush1.msra.mxu0 0.0
    %468 = vmatprep.subr.mxu0 0.0
    %469 = vmatpush1.msra.mxu0 0.0
    %470 = vmatprep.subr.mxu0 0.0
    %471 = vmatpush1.msra.mxu0 0.0
    %472 = vmatprep.subr.mxu0 0.0
    %473 = vmatpush1.msra.mxu0 0.0
    %474 = vmatprep.subr.mxu0 0.0
    %475 = vmatpush1.msra.mxu0 0.0
    %476 = vmatprep.subr.mxu0 0.0
    %477 = vmatpush1.msra.mxu0 0.0
    %478 = vmatprep.subr.mxu0 0.0
    %479 = vmatpush1.msra.mxu0 0.0
    %480 = vmatprep.subr.mxu0 0.0
    %481 = vmatpush1.msra.mxu0 0.0
    %482 = vmatprep.subr.mxu0 0.0
    %483 = vmatpush1.msra.mxu0 0.0
    %484 = vmatprep.subr.mxu0 0.0
    %485 = vmatpush1.msra.mxu0 0.0
    %486 = vmatprep.subr.mxu0 0.0
    %487 = vmatpush1.msra.mxu0 0.0
    %488 = vmatprep.mubr.f32.mxu0 0.0
    %489 = vmatmul.mubr.f32.gmra.mrb[0].mxu0 %v142
    %v490 = vpop.f32.mrb[0].mxu0
    %v491 = vadd.f32 %v58, %v490
    %v492 = vpop.f32.mrb[0].mxu0
    %493 = vdwg.mxu0
    %494 = vmatprep.subr.mxu0 0.0
    %495 = vmatpush1.msra.mxu0 %v35
    %496 = vmatprep.subr.mxu0 0.0
    %497 = vmatpush1.msra.mxu0 %v36
    %498 = vmatprep.subr.mxu0 0.0
    %499 = vmatpush1.msra.mxu0 %v37
    %500 = vmatprep.subr.mxu0 0.0
    %501 = vmatpush1.msra.mxu0 %v38
    %502 = vmatprep.subr.mxu0 0.0
    %503 = vmatpush1.msra.mxu0 0.0
    %504 = vmatprep.subr.mxu0 0.0
    %505 = vmatpush1.msra.mxu0 0.0
    %506 = vmatprep.subr.mxu0 0.0
    %507 = vmatpush1.msra.mxu0 0.0
    %508 = vmatprep.subr.mxu0 0.0
    %509 = vmatpush1.msra.mxu0 0.0
    %510 = vmatprep.subr.mxu0 0.0
    %511 = vmatpush1.msra.mxu0 0.0
    %512 = vmatprep.subr.mxu0 0.0
    %513 = vmatpush1.msra.mxu0 0.0
    %514 = vmatprep.subr.mxu0 0.0
    %515 = vmatpush1.msra.mxu0 0.0
    %516 = vmatprep.subr.mxu0 0.0
    %517 = vmatpush1.msra.mxu0 0.0
    %518 = vmatprep.subr.mxu0 0.0
    %519 = vmatpush1.msra.mxu0 0.0
    %520 = vmatprep.subr.mxu0 0.0
    %521 = vmatpush1.msra.mxu0 0.0
    %522 = vmatprep.subr.mxu0 0.0
    %523 = vmatpush1.msra.mxu0 0.0
    %524 = vmatprep.subr.mxu0 0.0
    %525 = vmatpush1.msra.mxu0 0.0
    %526 = vmatprep.subr.mxu0 0.0
    %527 = vmatpush1.msra.mxu0 0.0
    %528 = vmatprep.subr.mxu0 0.0
    %529 = vmatpush1.msra.mxu0 0.0
    %530 = vmatprep.subr.mxu0 0.0
    %531 = vmatpush1.msra.mxu0 0.0
    %532 = vmatprep.subr.mxu0 0.0
    %533 = vmatpush1.msra.mxu0 0.0
    %534 = vmatprep.subr.mxu0 0.0
    %535 = vmatpush1.msra.mxu0 0.0
    %536 = vmatprep.subr.mxu0 0.0
    %537 = vmatpush1.msra.mxu0 0.0
    %538 = vmatprep.subr.mxu0 0.0
    %539 = vmatpush1.msra.mxu0 0.0
    %540 = vmatprep.subr.mxu0 0.0
    %541 = vmatpush1.msra.mxu0 0.0
    %542 = vmatprep.subr.mxu0 0.0
    %543 = vmatpush1.msra.mxu0 0.0
    %544 = vmatprep.subr.mxu0 0.0
    %545 = vmatpush1.msra.mxu0 0.0
    %546 = vmatprep.subr.mxu0 0.0
    %547 = vmatpush1.msra.mxu0 0.0
    %548 = vmatprep.subr.mxu0 0.0
    %549 = vmatpush1.msra.mxu0 0.0
    %550 = vmatprep.subr.mxu0 0.0
    %551 = vmatpush1.msra.mxu0 0.0
    %552 = vmatprep.subr.mxu0 0.0
    %553 = vmatpush1.msra.mxu0 0.0
    %554 = vmatprep.subr.mxu0 0.0
    %555 = vmatpush1.msra.mxu0 0.0
    %556 = vmatprep.subr.mxu0 0.0
    %557 = vmatpush1.msra.mxu0 0.0
    %558 = vmatprep.mubr.f32.mxu0 0.0
    %559 = vmatmul.mubr.f32.gmra.mrb[0].mxu0 %v69
    %v560 = vpop.f32.mrb[0].mxu0
    %v561 = vadd.f32 %v62, %v560
    %v562 = vpop.f32.mrb[0].mxu0
    %563 = vdwg.mxu0
    %564 = vmatprep.subr.mxu0 0.0
    %565 = vmatpush1.msra.mxu0 %v35
    %566 = vmatprep.subr.mxu0 0.0
    %567 = vmatpush1.msra.mxu0 %v36
    %568 = vmatprep.subr.mxu0 0.0
    %569 = vmatpush1.msra.mxu0 %v37
    %570 = vmatprep.subr.mxu0 0.0
    %571 = vmatpush1.msra.mxu0 %v38
    %572 = vmatprep.subr.mxu0 0.0
    %573 = vmatpush1.msra.mxu0 0.0
    %574 = vmatprep.subr.mxu0 0.0
    %575 = vmatpush1.msra.mxu0 0.0
    %576 = vmatprep.subr.mxu0 0.0
    %577 = vmatpush1.msra.mxu0 0.0
    %578 = vmatprep.subr.mxu0 0.0
    %579 = vmatpush1.msra.mxu0 0.0
    %580 = vmatprep.subr.mxu0 0.0
    %581 = vmatpush1.msra.mxu0 0.0
    %582 = vmatprep.subr.mxu0 0.0
    %583 = vmatpush1.msra.mxu0 0.0
    %584 = vmatprep.subr.mxu0 0.0
    %585 = vmatpush1.msra.mxu0 0.0
    %586 = vmatprep.subr.mxu0 0.0
    %587 = vmatpush1.msra.mxu0 0.0
    %588 = vmatprep.subr.mxu0 0.0
    %589 = vmatpush1.msra.mxu0 0.0
    %590 = vmatprep.subr.mxu0 0.0
    %591 = vmatpush1.msra.mxu0 0.0
    %592 = vmatprep.subr.mxu0 0.0
    %593 = vmatpush1.msra.mxu0 0.0
    %594 = vmatprep.subr.mxu0 0.0
    %595 = vmatpush1.msra.mxu0 0.0
    %596 = vmatprep.subr.mxu0 0.0
    %597 = vmatpush1.msra.mxu0 0.0
    %598 = vmatprep.subr.mxu0 0.0
    %599 = vmatpush1.msra.mxu0 0.0
    %600 = vmatprep.subr.mxu0 0.0
    %601 = vmatpush1.msra.mxu0 0.0
    %602 = vmatprep.subr.mxu0 0.0
    %603 = vmatpush1.msra.mxu0 0.0
    %604 = vmatprep.subr.mxu0 0.0
    %605 = vmatpush1.msra.mxu0 0.0
    %606 = vmatprep.subr.mxu0 0.0
    %607 = vmatpush1.msra.mxu0 0.0
    %608 = vmatprep.subr.mxu0 0.0
    %609 = vmatpush1.msra.mxu0 0.0
    %610 = vmatprep.subr.mxu0 0.0
    %611 = vmatpush1.msra.mxu0 0.0
    %612 = vmatprep.subr.mxu0 0.0
    %613 = vmatpush1.msra.mxu0 0.0
    %614 = vmatprep.subr.mxu0 0.0
    %615 = vmatpush1.msra.mxu0 0.0
    %616 = vmatprep.subr.mxu0 0.0
    %617 = vmatpush1.msra.mxu0 0.0
    %618 = vmatprep.subr.mxu0 0.0
    %619 = vmatpush1.msra.mxu0 0.0
    %620 = vmatprep.subr.mxu0 0.0
    %621 = vmatpush1.msra.mxu0 0.0
    %622 = vmatprep.subr.mxu0 0.0
    %623 = vmatpush1.msra.mxu0 0.0
    %624 = vmatprep.subr.mxu0 0.0
    %625 = vmatpush1.msra.mxu0 0.0
    %626 = vmatprep.subr.mxu0 0.0
    %627 = vmatpush1.msra.mxu0 0.0
    %628 = vmatprep.mubr.f32.mxu0 0.0
    %629 = vmatmul.mubr.f32.gmra.mrb[0].mxu0 %v142
    %v630 = vpop.f32.mrb[0].mxu0
    %v631 = vadd.f32 %v62, %v630
    %v632 = vpop.f32.mrb[0].mxu0
    %633 = vdwg.mxu0
    %635 = vrot.lane.b32.xlu0 %v138, 120
    %v636 = vpop.permute.xlu0 %635
    %vm637 = vcmask 64512
    %v638 = vsel %vm637, %v138, 0
    %v640 = vsel %vm637, %v636, 0
    %642 = vmatprep.subr.mxu0 0.0
    %643 = vmatpush1.xpose.msra.mxu0 %v640
    %644 = vmatprep.subr.mxu0 0.0
    %645 = vmatpush1.xpose.msra.mxu0 0.0
    %646 = vmatprep.subr.mxu0 0.0
    %647 = vmatpush1.xpose.msra.mxu0 0.0
    %648 = vmatprep.subr.mxu0 0.0
    %649 = vmatpush1.xpose.msra.mxu0 0.0
    %650 = vmatprep.subr.mxu0 0.0
    %651 = vmatpush1.xpose.msra.mxu0 0.0
    %652 = vmatprep.subr.mxu0 0.0
    %653 = vmatpush1.xpose.msra.mxu0 0.0
    %654 = vmatprep.subr.mxu0 0.0
    %655 = vmatpush1.xpose.msra.mxu0 0.0
    %656 = vmatprep.subr.mxu0 0.0
    %657 = vmatpush1.xpose.msra.mxu0 0.0
    %658 = vmatprep.subr.mxu0 0.0
    %659 = vmatpush1.xpose.msra.mxu0 0.0
    %660 = vmatprep.subr.mxu0 0.0
    %661 = vmatpush1.xpose.msra.mxu0 0.0
    %662 = vmatprep.subr.mxu0 0.0
    %663 = vmatpush1.xpose.msra.mxu0 0.0
    %664 = vmatprep.subr.mxu0 0.0
    %665 = vmatpush1.xpose.msra.mxu0 0.0
    %666 = vmatprep.subr.mxu0 0.0
    %667 = vmatpush1.xpose.msra.mxu0 0.0
    %668 = vmatprep.subr.mxu0 0.0
    %669 = vmatpush1.xpose.msra.mxu0 0.0
    %670 = vmatprep.subr.mxu0 0.0
    %671 = vmatpush1.xpose.msra.mxu0 0.0
    %672 = vmatprep.subr.mxu0 0.0
    %673 = vmatpush1.xpose.msra.mxu0 0.0
    %674 = vmatprep.subr.mxu0 0.0
    %675 = vmatpush1.xpose.msra.mxu0 0.0
    %676 = vmatprep.subr.mxu0 0.0
    %677 = vmatpush1.xpose.msra.mxu0 0.0
    %678 = vmatprep.subr.mxu0 0.0
    %679 = vmatpush1.xpose.msra.mxu0 0.0
    %680 = vmatprep.subr.mxu0 0.0
    %681 = vmatpush1.xpose.msra.mxu0 0.0
    %682 = vmatprep.subr.mxu0 0.0
    %683 = vmatpush1.xpose.msra.mxu0 0.0
    %684 = vmatprep.subr.mxu0 0.0
    %685 = vmatpush1.xpose.msra.mxu0 0.0
    %686 = vmatprep.subr.mxu0 0.0
    %687 = vmatpush1.xpose.msra.mxu0 0.0
    %688 = vmatprep.subr.mxu0 0.0
    %689 = vmatpush1.xpose.msra.mxu0 0.0
    %690 = vmatprep.subr.mxu0 0.0
    %691 = vmatpush1.xpose.msra.mxu0 0.0
    %692 = vmatprep.subr.mxu0 0.0
    %693 = vmatpush1.xpose.msra.mxu0 0.0
    %694 = vmatprep.subr.mxu0 0.0
    %695 = vmatpush1.xpose.msra.mxu0 0.0
    %696 = vmatprep.subr.mxu0 0.0
    %697 = vmatpush1.xpose.msra.mxu0 0.0
    %698 = vmatprep.subr.mxu0 0.0
    %699 = vmatpush1.xpose.msra.mxu0 0.0
    %700 = vmatprep.subr.mxu0 0.0
    %701 = vmatpush1.xpose.msra.mxu0 0.0
    %702 = vmatprep.subr.mxu0 0.0
    %703 = vmatpush1.xpose.msra.mxu0 0.0
    %704 = vmatprep.subr.mxu0 0.0
    %705 = vmatpush1.xpose.msra.mxu0 0.0
    %706 = vmatprep.mubr.f32.mxu0 0.0
    %707 = vmatmul.mubr.f32.gmra.mrb[0].mxu0 %v638
    %v708 = vpop.f32.mrb[0].mxu0
    %v709 = vadd.f32 0.0, %v708
    %v710 = vpop.f32.mrb[0].mxu0
    %711 = vdwg.mxu0
    %713 = vrot.lane.b32.xlu0 %v211, 120
    %v714 = vpop.permute.xlu0 %713
    %v715 = vsel %vm637, %v211, 0
    %v717 = vsel %vm637, %v714, 0
    %719 = vmatprep.subr.mxu0 0.0
    %720 = vmatpush1.xpose.msra.mxu0 %v717
    %721 = vmatprep.subr.mxu0 0.0
    %722 = vmatpush1.xpose.msra.mxu0 0.0
    %723 = vmatprep.subr.mxu0 0.0
    %724 = vmatpush1.xpose.msra.mxu0 0.0
    %725 = vmatprep.subr.mxu0 0.0
    %726 = vmatpush1.xpose.msra.mxu0 0.0
    %727 = vmatprep.subr.mxu0 0.0
    %728 = vmatpush1.xpose.msra.mxu0 0.0
    %729 = vmatprep.subr.mxu0 0.0
    %730 = vmatpush1.xpose.msra.mxu0 0.0
    %731 = vmatprep.subr.mxu0 0.0
    %732 = vmatpush1.xpose.msra.mxu0 0.0
    %733 = vmatprep.subr.mxu0 0.0
    %734 = vmatpush1.xpose.msra.mxu0 0.0
    %735 = vmatprep.subr.mxu0 0.0
    %736 = vmatpush1.xpose.msra.mxu0 0.0
    %737 = vmatprep.subr.mxu0 0.0
    %738 = vmatpush1.xpose.msra.mxu0 0.0
    %739 = vmatprep.subr.mxu0 0.0
    %740 = vmatpush1.xpose.msra.mxu0 0.0
    %741 = vmatprep.subr.mxu0 0.0
    %742 = vmatpush1.xpose.msra.mxu0 0.0
    %743 = vmatprep.subr.mxu0 0.0
    %744 = vmatpush1.xpose.msra.mxu0 0.0
    %745 = vmatprep.subr.mxu0 0.0
    %746 = vmatpush1.xpose.msra.mxu0 0.0
    %747 = vmatprep.subr.mxu0 0.0
    %748 = vmatpush1.xpose.msra.mxu0 0.0
    %749 = vmatprep.subr.mxu0 0.0
    %750 = vmatpush1.xpose.msra.mxu0 0.0
    %751 = vmatprep.subr.mxu0 0.0
    %752 = vmatpush1.xpose.msra.mxu0 0.0
    %753 = vmatprep.subr.mxu0 0.0
    %754 = vmatpush1.xpose.msra.mxu0 0.0
    %755 = vmatprep.subr.mxu0 0.0
    %756 = vmatpush1.xpose.msra.mxu0 0.0
    %757 = vmatprep.subr.mxu0 0.0
    %758 = vmatpush1.xpose.msra.mxu0 0.0
    %759 = vmatprep.subr.mxu0 0.0
    %760 = vmatpush1.xpose.msra.mxu0 0.0
    %761 = vmatprep.subr.mxu0 0.0
    %762 = vmatpush1.xpose.msra.mxu0 0.0
    %763 = vmatprep.subr.mxu0 0.0
    %764 = vmatpush1.xpose.msra.mxu0 0.0
    %765 = vmatprep.subr.mxu0 0.0
    %766 = vmatpush1.xpose.msra.mxu0 0.0
    %767 = vmatprep.subr.mxu0 0.0
    %768 = vmatpush1.xpose.msra.mxu0 0.0
    %769 = vmatprep.subr.mxu0 0.0
    %770 = vmatpush1.xpose.msra.mxu0 0.0
    %771 = vmatprep.subr.mxu0 0.0
    %772 = vmatpush1.xpose.msra.mxu0 0.0
    %773 = vmatprep.subr.mxu0 0.0
    %774 = vmatpush1.xpose.msra.mxu0 0.0
    %775 = vmatprep.subr.mxu0 0.0
    %776 = vmatpush1.xpose.msra.mxu0 0.0
    %777 = vmatprep.subr.mxu0 0.0
    %778 = vmatpush1.xpose.msra.mxu0 0.0
    %779 = vmatprep.subr.mxu0 0.0
    %780 = vmatpush1.xpose.msra.mxu0 0.0
    %781 = vmatprep.subr.mxu0 0.0
    %782 = vmatpush1.xpose.msra.mxu0 0.0
    %783 = vmatprep.mubr.f32.mxu0 0.0
    %784 = vmatmul.mubr.f32.gmra.mrb[0].mxu0 %v715
    %v785 = vpop.f32.mrb[0].mxu0
    %v786 = vadd.f32 0.0, %v785
    %v787 = vpop.f32.mrb[0].mxu0
    %788 = vdwg.mxu0
    %790 = vrot.lane.b32.xlu0 %v281, 120
    %v791 = vpop.permute.xlu0 %790
    %v792 = vsel %vm637, %v281, 0
    %v794 = vsel %vm637, %v791, 0
    %796 = vmatprep.subr.mxu0 0.0
    %797 = vmatpush1.xpose.msra.mxu0 %v794
    %798 = vmatprep.subr.mxu0 0.0
    %799 = vmatpush1.xpose.msra.mxu0 0.0
    %800 = vmatprep.subr.mxu0 0.0
    %801 = vmatpush1.xpose.msra.mxu0 0.0
    %802 = vmatprep.subr.mxu0 0.0
    %803 = vmatpush1.xpose.msra.mxu0 0.0
    %804 = vmatprep.subr.mxu0 0.0
    %805 = vmatpush1.xpose.msra.mxu0 0.0
    %806 = vmatprep.subr.mxu0 0.0
    %807 = vmatpush1.xpose.msra.mxu0 0.0
    %808 = vmatprep.subr.mxu0 0.0
    %809 = vmatpush1.xpose.msra.mxu0 0.0
    %810 = vmatprep.subr.mxu0 0.0
    %811 = vmatpush1.xpose.msra.mxu0 0.0
    %812 = vmatprep.subr.mxu0 0.0
    %813 = vmatpush1.xpose.msra.mxu0 0.0
    %814 = vmatprep.subr.mxu0 0.0
    %815 = vmatpush1.xpose.msra.mxu0 0.0
    %816 = vmatprep.subr.mxu0 0.0
    %817 = vmatpush1.xpose.msra.mxu0 0.0
    %818 = vmatprep.subr.mxu0 0.0
    %819 = vmatpush1.xpose.msra.mxu0 0.0
    %820 = vmatprep.subr.mxu0 0.0
    %821 = vmatpush1.xpose.msra.mxu0 0.0
    %822 = vmatprep.subr.mxu0 0.0
    %823 = vmatpush1.xpose.msra.mxu0 0.0
    %824 = vmatprep.subr.mxu0 0.0
    %825 = vmatpush1.xpose.msra.mxu0 0.0
    %826 = vmatprep.subr.mxu0 0.0
    %827 = vmatpush1.xpose.msra.mxu0 0.0
    %828 = vmatprep.subr.mxu0 0.0
    %829 = vmatpush1.xpose.msra.mxu0 0.0
    %830 = vmatprep.subr.mxu0 0.0
    %831 = vmatpush1.xpose.msra.mxu0 0.0
    %832 = vmatprep.subr.mxu0 0.0
    %833 = vmatpush1.xpose.msra.mxu0 0.0
    %834 = vmatprep.subr.mxu0 0.0
    %835 = vmatpush1.xpose.msra.mxu0 0.0
    %836 = vmatprep.subr.mxu0 0.0
    %837 = vmatpush1.xpose.msra.mxu0 0.0
    %838 = vmatprep.subr.mxu0 0.0
    %839 = vmatpush1.xpose.msra.mxu0 0.0
    %840 = vmatprep.subr.mxu0 0.0
    %841 = vmatpush1.xpose.msra.mxu0 0.0
    %842 = vmatprep.subr.mxu0 0.0
    %843 = vmatpush1.xpose.msra.mxu0 0.0
    %844 = vmatprep.subr.mxu0 0.0
    %845 = vmatpush1.xpose.msra.mxu0 0.0
    %846 = vmatprep.subr.mxu0 0.0
    %847 = vmatpush1.xpose.msra.mxu0 0.0
    %848 = vmatprep.subr.mxu0 0.0
    %849 = vmatpush1.xpose.msra.mxu0 0.0
    %850 = vmatprep.subr.mxu0 0.0
    %851 = vmatpush1.xpose.msra.mxu0 0.0
    %852 = vmatprep.subr.mxu0 0.0
    %853 = vmatpush1.xpose.msra.mxu0 0.0
    %854 = vmatprep.subr.mxu0 0.0
    %855 = vmatpush1.xpose.msra.mxu0 0.0
    %856 = vmatprep.subr.mxu0 0.0
    %857 = vmatpush1.xpose.msra.mxu0 0.0
    %858 = vmatprep.subr.mxu0 0.0
    %859 = vmatpush1.xpose.msra.mxu0 0.0
    %860 = vmatprep.mubr.f32.mxu0 0.0
    %861 = vmatmul.mubr.f32.gmra.mrb[0].mxu0 %v792
    %v862 = vpop.f32.mrb[0].mxu0
    %v863 = vadd.f32 0.0, %v862
    %v864 = vpop.f32.mrb[0].mxu0
    %865 = vdwg.mxu0
    %867 = vrot.lane.b32.xlu0 %v351, 120
    %v868 = vpop.permute.xlu0 %867
    %v869 = vsel %vm637, %v351, 0
    %v871 = vsel %vm637, %v868, 0
    %873 = vmatprep.subr.mxu0 0.0
    %874 = vmatpush1.xpose.msra.mxu0 %v871
    %875 = vmatprep.subr.mxu0 0.0
    %876 = vmatpush1.xpose.msra.mxu0 0.0
    %877 = vmatprep.subr.mxu0 0.0
    %878 = vmatpush1.xpose.msra.mxu0 0.0
    %879 = vmatprep.subr.mxu0 0.0
    %880 = vmatpush1.xpose.msra.mxu0 0.0
    %881 = vmatprep.subr.mxu0 0.0
    %882 = vmatpush1.xpose.msra.mxu0 0.0
    %883 = vmatprep.subr.mxu0 0.0
    %884 = vmatpush1.xpose.msra.mxu0 0.0
    %885 = vmatprep.subr.mxu0 0.0
    %886 = vmatpush1.xpose.msra.mxu0 0.0
    %887 = vmatprep.subr.mxu0 0.0
    %888 = vmatpush1.xpose.msra.mxu0 0.0
    %889 = vmatprep.subr.mxu0 0.0
    %890 = vmatpush1.xpose.msra.mxu0 0.0
    %891 = vmatprep.subr.mxu0 0.0
    %892 = vmatpush1.xpose.msra.mxu0 0.0
    %893 = vmatprep.subr.mxu0 0.0
    %894 = vmatpush1.xpose.msra.mxu0 0.0
    %895 = vmatprep.subr.mxu0 0.0
    %896 = vmatpush1.xpose.msra.mxu0 0.0
    %897 = vmatprep.subr.mxu0 0.0
    %898 = vmatpush1.xpose.msra.mxu0 0.0
    %899 = vmatprep.subr.mxu0 0.0
    %900 = vmatpush1.xpose.msra.mxu0 0.0
    %901 = vmatprep.subr.mxu0 0.0
    %902 = vmatpush1.xpose.msra.mxu0 0.0
    %903 = vmatprep.subr.mxu0 0.0
    %904 = vmatpush1.xpose.msra.mxu0 0.0
    %905 = vmatprep.subr.mxu0 0.0
    %906 = vmatpush1.xpose.msra.mxu0 0.0
    %907 = vmatprep.subr.mxu0 0.0
    %908 = vmatpush1.xpose.msra.mxu0 0.0
    %909 = vmatprep.subr.mxu0 0.0
    %910 = vmatpush1.xpose.msra.mxu0 0.0
    %911 = vmatprep.subr.mxu0 0.0
    %912 = vmatpush1.xpose.msra.mxu0 0.0
    %913 = vmatprep.subr.mxu0 0.0
    %914 = vmatpush1.xpose.msra.mxu0 0.0
    %915 = vmatprep.subr.mxu0 0.0
    %916 = vmatpush1.xpose.msra.mxu0 0.0
    %917 = vmatprep.subr.mxu0 0.0
    %918 = vmatpush1.xpose.msra.mxu0 0.0
    %919 = vmatprep.subr.mxu0 0.0
    %920 = vmatpush1.xpose.msra.mxu0 0.0
    %921 = vmatprep.subr.mxu0 0.0
    %922 = vmatpush1.xpose.msra.mxu0 0.0
    %923 = vmatprep.subr.mxu0 0.0
    %924 = vmatpush1.xpose.msra.mxu0 0.0
    %925 = vmatprep.subr.mxu0 0.0
    %926 = vmatpush1.xpose.msra.mxu0 0.0
    %927 = vmatprep.subr.mxu0 0.0
    %928 = vmatpush1.xpose.msra.mxu0 0.0
    %929 = vmatprep.subr.mxu0 0.0
    %930 = vmatpush1.xpose.msra.mxu0 0.0
    %931 = vmatprep.subr.mxu0 0.0
    %932 = vmatpush1.xpose.msra.mxu0 0.0
    %933 = vmatprep.subr.mxu0 0.0
    %934 = vmatpush1.xpose.msra.mxu0 0.0
    %935 = vmatprep.subr.mxu0 0.0
    %936 = vmatpush1.xpose.msra.mxu0 0.0
    %937 = vmatprep.mubr.f32.mxu0 0.0
    %938 = vmatmul.mubr.f32.gmra.mrb[0].mxu0 %v869
    %v939 = vpop.f32.mrb[0].mxu0
    %v940 = vadd.f32 0.0, %v939
    %v941 = vpop.f32.mrb[0].mxu0
    %942 = vdwg.mxu0
    %944 = vrot.lane.b32.xlu0 %v421, 120
    %v945 = vpop.permute.xlu0 %944
    %v946 = vsel %vm637, %v421, 0
    %v948 = vsel %vm637, %v945, 0
    %950 = vmatprep.subr.mxu0 0.0
    %951 = vmatpush1.xpose.msra.mxu0 %v948
    %952 = vmatprep.subr.mxu0 0.0
    %953 = vmatpush1.xpose.msra.mxu0 0.0
    %954 = vmatprep.subr.mxu0 0.0
    %955 = vmatpush1.xpose.msra.mxu0 0.0
    %956 = vmatprep.subr.mxu0 0.0
    %957 = vmatpush1.xpose.msra.mxu0 0.0
    %958 = vmatprep.subr.mxu0 0.0
    %959 = vmatpush1.xpose.msra.mxu0 0.0
    %960 = vmatprep.subr.mxu0 0.0
    %961 = vmatpush1.xpose.msra.mxu0 0.0
    %962 = vmatprep.subr.mxu0 0.0
    %963 = vmatpush1.xpose.msra.mxu0 0.0
    %964 = vmatprep.subr.mxu0 0.0
    %965 = vmatpush1.xpose.msra.mxu0 0.0
    %966 = vmatprep.subr.mxu0 0.0
    %967 = vmatpush1.xpose.msra.mxu0 0.0
    %968 = vmatprep.subr.mxu0 0.0
    %969 = vmatpush1.xpose.msra.mxu0 0.0
    %970 = vmatprep.subr.mxu0 0.0
    %971 = vmatpush1.xpose.msra.mxu0 0.0
    %972 = vmatprep.subr.mxu0 0.0
    %973 = vmatpush1.xpose.msra.mxu0 0.0
    %974 = vmatprep.subr.mxu0 0.0
    %975 = vmatpush1.xpose.msra.mxu0 0.0
    %976 = vmatprep.subr.mxu0 0.0
    %977 = vmatpush1.xpose.msra.mxu0 0.0
    %978 = vmatprep.subr.mxu0 0.0
    %979 = vmatpush1.xpose.msra.mxu0 0.0
    %980 = vmatprep.subr.mxu0 0.0
    %981 = vmatpush1.xpose.msra.mxu0 0.0
    %982 = vmatprep.subr.mxu0 0.0
    %983 = vmatpush1.xpose.msra.mxu0 0.0
    %984 = vmatprep.subr.mxu0 0.0
    %985 = vmatpush1.xpose.msra.mxu0 0.0
    %986 = vmatprep.subr.mxu0 0.0
    %987 = vmatpush1.xpose.msra.mxu0 0.0
    %988 = vmatprep.subr.mxu0 0.0
    %989 = vmatpush1.xpose.msra.mxu0 0.0
    %990 = vmatprep.subr.mxu0 0.0
    %991 = vmatpush1.xpose.msra.mxu0 0.0
    %992 = vmatprep.subr.mxu0 0.0
    %993 = vmatpush1.xpose.msra.mxu0 0.0
    %994 = vmatprep.subr.mxu0 0.0
    %995 = vmatpush1.xpose.msra.mxu0 0.0
    %996 = vmatprep.subr.mxu0 0.0
    %997 = vmatpush1.xpose.msra.mxu0 0.0
    %998 = vmatprep.subr.mxu0 0.0
    %999 = vmatpush1.xpose.msra.mxu0 0.0
    %1000 = vmatprep.subr.mxu0 0.0
    %1001 = vmatpush1.xpose.msra.mxu0 0.0
    %1002 = vmatprep.subr.mxu0 0.0
    %1003 = vmatpush1.xpose.msra.mxu0 0.0
    %1004 = vmatprep.subr.mxu0 0.0
    %1005 = vmatpush1.xpose.msra.mxu0 0.0
    %1006 = vmatprep.subr.mxu0 0.0
    %1007 = vmatpush1.xpose.msra.mxu0 0.0
    %1008 = vmatprep.subr.mxu0 0.0
    %1009 = vmatpush1.xpose.msra.mxu0 0.0
    %1010 = vmatprep.subr.mxu0 0.0
    %1011 = vmatpush1.xpose.msra.mxu0 0.0
    %1012 = vmatprep.subr.mxu0 0.0
    %1013 = vmatpush1.xpose.msra.mxu0 0.0
    %1014 = vmatprep.mubr.f32.mxu0 0.0
    %1015 = vmatmul.mubr.f32.gmra.mrb[0].mxu0 %v946
    %v1016 = vpop.f32.mrb[0].mxu0
    %v1017 = vadd.f32 0.0, %v1016
    %v1018 = vpop.f32.mrb[0].mxu0
    %1019 = vdwg.mxu0
    %1021 = vrot.lane.b32.xlu0 %v491, 120
    %v1022 = vpop.permute.xlu0 %1021
    %v1023 = vsel %vm637, %v491, 0
    %v1025 = vsel %vm637, %v1022, 0
    %1027 = vmatprep.subr.mxu0 0.0
    %1028 = vmatpush1.xpose.msra.mxu0 %v1025
    %1029 = vmatprep.subr.mxu0 0.0
    %1030 = vmatpush1.xpose.msra.mxu0 0.0
    %1031 = vmatprep.subr.mxu0 0.0
    %1032 = vmatpush1.xpose.msra.mxu0 0.0
    %1033 = vmatprep.subr.mxu0 0.0
    %1034 = vmatpush1.xpose.msra.mxu0 0.0
    %1035 = vmatprep.subr.mxu0 0.0
    %1036 = vmatpush1.xpose.msra.mxu0 0.0
    %1037 = vmatprep.subr.mxu0 0.0
    %1038 = vmatpush1.xpose.msra.mxu0 0.0
    %1039 = vmatprep.subr.mxu0 0.0
    %1040 = vmatpush1.xpose.msra.mxu0 0.0
    %1041 = vmatprep.subr.mxu0 0.0
    %1042 = vmatpush1.xpose.msra.mxu0 0.0
    %1043 = vmatprep.subr.mxu0 0.0
    %1044 = vmatpush1.xpose.msra.mxu0 0.0
    %1045 = vmatprep.subr.mxu0 0.0
    %1046 = vmatpush1.xpose.msra.mxu0 0.0
    %1047 = vmatprep.subr.mxu0 0.0
    %1048 = vmatpush1.xpose.msra.mxu0 0.0
    %1049 = vmatprep.subr.mxu0 0.0
    %1050 = vmatpush1.xpose.msra.mxu0 0.0
    %1051 = vmatprep.subr.mxu0 0.0
    %1052 = vmatpush1.xpose.msra.mxu0 0.0
    %1053 = vmatprep.subr.mxu0 0.0
    %1054 = vmatpush1.xpose.msra.mxu0 0.0
    %1055 = vmatprep.subr.mxu0 0.0
    %1056 = vmatpush1.xpose.msra.mxu0 0.0
    %1057 = vmatprep.subr.mxu0 0.0
    %1058 = vmatpush1.xpose.msra.mxu0 0.0
    %1059 = vmatprep.subr.mxu0 0.0
    %1060 = vmatpush1.xpose.msra.mxu0 0.0
    %1061 = vmatprep.subr.mxu0 0.0
    %1062 = vmatpush1.xpose.msra.mxu0 0.0
    %1063 = vmatprep.subr.mxu0 0.0
    %1064 = vmatpush1.xpose.msra.mxu0 0.0
    %1065 = vmatprep.subr.mxu0 0.0
    %1066 = vmatpush1.xpose.msra.mxu0 0.0
    %1067 = vmatprep.subr.mxu0 0.0
    %1068 = vmatpush1.xpose.msra.mxu0 0.0
    %1069 = vmatprep.subr.mxu0 0.0
    %1070 = vmatpush1.xpose.msra.mxu0 0.0
    %1071 = vmatprep.subr.mxu0 0.0
    %1072 = vmatpush1.xpose.msra.mxu0 0.0
    %1073 = vmatprep.subr.mxu0 0.0
    %1074 = vmatpush1.xpose.msra.mxu0 0.0
    %1075 = vmatprep.subr.mxu0 0.0
    %1076 = vmatpush1.xpose.msra.mxu0 0.0
    %1077 = vmatprep.subr.mxu0 0.0
    %1078 = vmatpush1.xpose.msra.mxu0 0.0
    %1079 = vmatprep.subr.mxu0 0.0
    %1080 = vmatpush1.xpose.msra.mxu0 0.0
    %1081 = vmatprep.subr.mxu0 0.0
    %1082 = vmatpush1.xpose.msra.mxu0 0.0
    %1083 = vmatprep.subr.mxu0 0.0
    %1084 = vmatpush1.xpose.msra.mxu0 0.0
    %1085 = vmatprep.subr.mxu0 0.0
    %1086 = vmatpush1.xpose.msra.mxu0 0.0
    %1087 = vmatprep.subr.mxu0 0.0
    %1088 = vmatpush1.xpose.msra.mxu0 0.0
    %1089 = vmatprep.subr.mxu0 0.0
    %1090 = vmatpush1.xpose.msra.mxu0 0.0
    %1091 = vmatprep.mubr.f32.mxu0 0.0
    %1092 = vmatmul.mubr.f32.gmra.mrb[0].mxu0 %v1023
    %v1093 = vpop.f32.mrb[0].mxu0
    %v1094 = vadd.f32 0.0, %v1093
    %v1095 = vpop.f32.mrb[0].mxu0
    %1096 = vdwg.mxu0
    %1098 = vrot.lane.b32.xlu0 %v561, 120
    %v1099 = vpop.permute.xlu0 %1098
    %v1100 = vsel %vm637, %v561, 0
    %v1102 = vsel %vm637, %v1099, 0
    %1104 = vmatprep.subr.mxu0 0.0
    %1105 = vmatpush1.xpose.msra.mxu0 %v1102
    %1106 = vmatprep.subr.mxu0 0.0
    %1107 = vmatpush1.xpose.msra.mxu0 0.0
    %1108 = vmatprep.subr.mxu0 0.0
    %1109 = vmatpush1.xpose.msra.mxu0 0.0
    %1110 = vmatprep.subr.mxu0 0.0
    %1111 = vmatpush1.xpose.msra.mxu0 0.0
    %1112 = vmatprep.subr.mxu0 0.0
    %1113 = vmatpush1.xpose.msra.mxu0 0.0
    %1114 = vmatprep.subr.mxu0 0.0
    %1115 = vmatpush1.xpose.msra.mxu0 0.0
    %1116 = vmatprep.subr.mxu0 0.0
    %1117 = vmatpush1.xpose.msra.mxu0 0.0
    %1118 = vmatprep.subr.mxu0 0.0
    %1119 = vmatpush1.xpose.msra.mxu0 0.0
    %1120 = vmatprep.subr.mxu0 0.0
    %1121 = vmatpush1.xpose.msra.mxu0 0.0
    %1122 = vmatprep.subr.mxu0 0.0
    %1123 = vmatpush1.xpose.msra.mxu0 0.0
    %1124 = vmatprep.subr.mxu0 0.0
    %1125 = vmatpush1.xpose.msra.mxu0 0.0
    %1126 = vmatprep.subr.mxu0 0.0
    %1127 = vmatpush1.xpose.msra.mxu0 0.0
    %1128 = vmatprep.subr.mxu0 0.0
    %1129 = vmatpush1.xpose.msra.mxu0 0.0
    %1130 = vmatprep.subr.mxu0 0.0
    %1131 = vmatpush1.xpose.msra.mxu0 0.0
    %1132 = vmatprep.subr.mxu0 0.0
    %1133 = vmatpush1.xpose.msra.mxu0 0.0
    %1134 = vmatprep.subr.mxu0 0.0
    %1135 = vmatpush1.xpose.msra.mxu0 0.0
    %1136 = vmatprep.subr.mxu0 0.0
    %1137 = vmatpush1.xpose.msra.mxu0 0.0
    %1138 = vmatprep.subr.mxu0 0.0
    %1139 = vmatpush1.xpose.msra.mxu0 0.0
    %1140 = vmatprep.subr.mxu0 0.0
    %1141 = vmatpush1.xpose.msra.mxu0 0.0
    %1142 = vmatprep.subr.mxu0 0.0
    %1143 = vmatpush1.xpose.msra.mxu0 0.0
    %1144 = vmatprep.subr.mxu0 0.0
    %1145 = vmatpush1.xpose.msra.mxu0 0.0
    %1146 = vmatprep.subr.mxu0 0.0
    %1147 = vmatpush1.xpose.msra.mxu0 0.0
    %1148 = vmatprep.subr.mxu0 0.0
    %1149 = vmatpush1.xpose.msra.mxu0 0.0
    %1150 = vmatprep.subr.mxu0 0.0
    %1151 = vmatpush1.xpose.msra.mxu0 0.0
    %1152 = vmatprep.subr.mxu0 0.0
    %1153 = vmatpush1.xpose.msra.mxu0 0.0
    %1154 = vmatprep.subr.mxu0 0.0
    %1155 = vmatpush1.xpose.msra.mxu0 0.0
    %1156 = vmatprep.subr.mxu0 0.0
    %1157 = vmatpush1.xpose.msra.mxu0 0.0
    %1158 = vmatprep.subr.mxu0 0.0
    %1159 = vmatpush1.xpose.msra.mxu0 0.0
    %1160 = vmatprep.subr.mxu0 0.0
    %1161 = vmatpush1.xpose.msra.mxu0 0.0
    %1162 = vmatprep.subr.mxu0 0.0
    %1163 = vmatpush1.xpose.msra.mxu0 0.0
    %1164 = vmatprep.subr.mxu0 0.0
    %1165 = vmatpush1.xpose.msra.mxu0 0.0
    %1166 = vmatprep.subr.mxu0 0.0
    %1167 = vmatpush1.xpose.msra.mxu0 0.0
    %1168 = vmatprep.mubr.f32.mxu0 0.0
    %1169 = vmatmul.mubr.f32.gmra.mrb[0].mxu0 %v1100
    %v1170 = vpop.f32.mrb[0].mxu0
    %v1171 = vadd.f32 0.0, %v1170
    %v1172 = vpop.f32.mrb[0].mxu0
    %1173 = vdwg.mxu0
    %1175 = vrot.lane.b32.xlu0 %v631, 120
    %v1176 = vpop.permute.xlu0 %1175
    %v1177 = vsel %vm637, %v631, 0
    %v1179 = vsel %vm637, %v1176, 0
    %1181 = vmatprep.subr.mxu0 0.0
    %1182 = vmatpush1.xpose.msra.mxu0 %v1179
    %1183 = vmatprep.subr.mxu0 0.0
    %1184 = vmatpush1.xpose.msra.mxu0 0.0
    %1185 = vmatprep.subr.mxu0 0.0
    %1186 = vmatpush1.xpose.msra.mxu0 0.0
    %1187 = vmatprep.subr.mxu0 0.0
    %1188 = vmatpush1.xpose.msra.mxu0 0.0
    %1189 = vmatprep.subr.mxu0 0.0
    %1190 = vmatpush1.xpose.msra.mxu0 0.0
    %1191 = vmatprep.subr.mxu0 0.0
    %1192 = vmatpush1.xpose.msra.mxu0 0.0
    %1193 = vmatprep.subr.mxu0 0.0
    %1194 = vmatpush1.xpose.msra.mxu0 0.0
    %1195 = vmatprep.subr.mxu0 0.0
    %1196 = vmatpush1.xpose.msra.mxu0 0.0
    %1197 = vmatprep.subr.mxu0 0.0
    %1198 = vmatpush1.xpose.msra.mxu0 0.0
    %1199 = vmatprep.subr.mxu0 0.0
    %1200 = vmatpush1.xpose.msra.mxu0 0.0
    %1201 = vmatprep.subr.mxu0 0.0
    %1202 = vmatpush1.xpose.msra.mxu0 0.0
    %1203 = vmatprep.subr.mxu0 0.0
    %1204 = vmatpush1.xpose.msra.mxu0 0.0
    %1205 = vmatprep.subr.mxu0 0.0
    %1206 = vmatpush1.xpose.msra.mxu0 0.0
    %1207 = vmatprep.subr.mxu0 0.0
    %1208 = vmatpush1.xpose.msra.mxu0 0.0
    %1209 = vmatprep.subr.mxu0 0.0
    %1210 = vmatpush1.xpose.msra.mxu0 0.0
    %1211 = vmatprep.subr.mxu0 0.0
    %1212 = vmatpush1.xpose.msra.mxu0 0.0
    %1213 = vmatprep.subr.mxu0 0.0
    %1214 = vmatpush1.xpose.msra.mxu0 0.0
    %1215 = vmatprep.subr.mxu0 0.0
    %1216 = vmatpush1.xpose.msra.mxu0 0.0
    %1217 = vmatprep.subr.mxu0 0.0
    %1218 = vmatpush1.xpose.msra.mxu0 0.0
    %1219 = vmatprep.subr.mxu0 0.0
    %1220 = vmatpush1.xpose.msra.mxu0 0.0
    %1221 = vmatprep.subr.mxu0 0.0
    %1222 = vmatpush1.xpose.msra.mxu0 0.0
    %1223 = vmatprep.subr.mxu0 0.0
    %1224 = vmatpush1.xpose.msra.mxu0 0.0
    %1225 = vmatprep.subr.mxu0 0.0
    %1226 = vmatpush1.xpose.msra.mxu0 0.0
    %1227 = vmatprep.subr.mxu0 0.0
    %1228 = vmatpush1.xpose.msra.mxu0 0.0
    %1229 = vmatprep.subr.mxu0 0.0
    %1230 = vmatpush1.xpose.msra.mxu0 0.0
    %1231 = vmatprep.subr.mxu0 0.0
    %1232 = vmatpush1.xpose.msra.mxu0 0.0
    %1233 = vmatprep.subr.mxu0 0.0
    %1234 = vmatpush1.xpose.msra.mxu0 0.0
    %1235 = vmatprep.subr.mxu0 0.0
    %1236 = vmatpush1.xpose.msra.mxu0 0.0
    %1237 = vmatprep.subr.mxu0 0.0
    %1238 = vmatpush1.xpose.msra.mxu0 0.0
    %1239 = vmatprep.subr.mxu0 0.0
    %1240 = vmatpush1.xpose.msra.mxu0 0.0
    %1241 = vmatprep.subr.mxu0 0.0
    %1242 = vmatpush1.xpose.msra.mxu0 0.0
    %1243 = vmatprep.subr.mxu0 0.0
    %1244 = vmatpush1.xpose.msra.mxu0 0.0
    %1245 = vmatprep.mubr.f32.mxu0 0.0
    %1246 = vmatmul.mubr.f32.gmra.mrb[0].mxu0 %v1177
    %v1247 = vpop.f32.mrb[0].mxu0
    %v1248 = vadd.f32 0.0, %v1247
    %v1249 = vpop.f32.mrb[0].mxu0
    %1250 = vdwg.mxu0
    %v1251 = vsel %vm637, %v709, -inf
    %1252 = vmax.xlane.f32.xlu0 %v1251
    %v1253 = vpop.xlane.xlu0 %1252
    %v1254 = vsel %vm637, %v786, -inf
    %1255 = vmax.xlane.f32.xlu0 %v1254
    %v1256 = vpop.xlane.xlu0 %1255
    %v1257 = vsel %vm637, %v863, -inf
    %1258 = vmax.xlane.f32.xlu0 %v1257
    %v1259 = vpop.xlane.xlu0 %1258
    %v1260 = vsel %vm637, %v940, -inf
    %1261 = vmax.xlane.f32.xlu0 %v1260
    %v1262 = vpop.xlane.xlu0 %1261
    %v1263 = vsel %vm637, %v1017, -inf
    %1264 = vmax.xlane.f32.xlu0 %v1263
    %v1265 = vpop.xlane.xlu0 %1264
    %v1266 = vsel %vm637, %v1094, -inf
    %1267 = vmax.xlane.f32.xlu0 %v1266
    %v1268 = vpop.xlane.xlu0 %1267
    %v1269 = vsel %vm637, %v1171, -inf
    %1270 = vmax.xlane.f32.xlu0 %v1269
    %v1271 = vpop.xlane.xlu0 %1270
    %v1272 = vsel %vm637, %v1248, -inf
    %1273 = vmax.xlane.f32.xlu0 %v1272
    %v1274 = vpop.xlane.xlu0 %1273
    %v1275 = vsub.f32 %v709, %v1253
    %v1276 = vsub.f32 %v786, %v1256
    %v1277 = vsub.f32 %v863, %v1259
    %v1278 = vsub.f32 %v940, %v1262
    %v1279 = vsub.f32 %v1017, %v1265
    %v1280 = vsub.f32 %v1094, %v1268
    %v1281 = vsub.f32 %v1171, %v1271
    %v1282 = vsub.f32 %v1248, %v1274
    %v1283 = vmul.f32 %v1275, 1.442695
    %v1284 = vpow.pop %v1283
    %v1285 = vmul.f32 %v1276, 1.442695
    %v1286 = vpow.pop %v1285
    %v1287 = vmul.f32 %v1277, 1.442695
    %v1288 = vpow.pop %v1287
    %v1289 = vmul.f32 %v1278, 1.442695
    %v1290 = vpow.pop %v1289
    %v1291 = vmul.f32 %v1279, 1.442695
    %v1292 = vpow.pop %v1291
    %v1293 = vmul.f32 %v1280, 1.442695
    %v1294 = vpow.pop %v1293
    %v1295 = vmul.f32 %v1281, 1.442695
    %v1296 = vpow.pop %v1295
    %v1297 = vmul.f32 %v1282, 1.442695
    %v1298 = vpow.pop %v1297
    %v1299 = vsel %vm637, %v1284, 0.0
    %1300 = vadd.xlane.f32.xlu0 %v1299
    %v1301 = vpop.xlane.xlu0 %1300
    %v1302 = vsel %vm637, %v1286, 0.0
    %1303 = vadd.xlane.f32.xlu0 %v1302
    %v1304 = vpop.xlane.xlu0 %1303
    %v1305 = vsel %vm637, %v1288, 0.0
    %1306 = vadd.xlane.f32.xlu0 %v1305
    %v1307 = vpop.xlane.xlu0 %1306
    %v1308 = vsel %vm637, %v1290, 0.0
    %1309 = vadd.xlane.f32.xlu0 %v1308
    %v1310 = vpop.xlane.xlu0 %1309
    %v1311 = vsel %vm637, %v1292, 0.0
    %1312 = vadd.xlane.f32.xlu0 %v1311
    %v1313 = vpop.xlane.xlu0 %1312
    %v1314 = vsel %vm637, %v1294, 0.0
    %1315 = vadd.xlane.f32.xlu0 %v1314
    %v1316 = vpop.xlane.xlu0 %1315
    %v1317 = vsel %vm637, %v1296, 0.0
    %1318 = vadd.xlane.f32.xlu0 %v1317
    %v1319 = vpop.xlane.xlu0 %1318
    %v1320 = vsel %vm637, %v1298, 0.0
    %1321 = vadd.xlane.f32.xlu0 %v1320
    %v1322 = vpop.xlane.xlu0 %1321
    %v1323 = vrcp.pop %v1301
    %v1324 = vmul.f32 %v1284, %v1323
    %v1325 = vrcp.pop %v1304
    %v1326 = vmul.f32 %v1286, %v1325
    %v1327 = vrcp.pop %v1307
    %v1328 = vmul.f32 %v1288, %v1327
    %v1329 = vrcp.pop %v1310
    %v1330 = vmul.f32 %v1290, %v1329
    %v1331 = vrcp.pop %v1313
    %v1332 = vmul.f32 %v1292, %v1331
    %v1333 = vrcp.pop %v1316
    %v1334 = vmul.f32 %v1294, %v1333
    %v1335 = vrcp.pop %v1319
    %v1336 = vmul.f32 %v1296, %v1335
    %v1337 = vrcp.pop %v1322
    %v1338 = vmul.f32 %v1298, %v1337
    %1339 = vrot.lane.b32.xlu0 %v138, 112
    %v1340 = vpop.permute.xlu0 %1339
    %v1343 = vsel %vm637, %v1324, 0
    %1345 = vmatprep.subr.mxu0 0.0
    %1346 = vmatpush1.msra.mxu0 %v1340
    %1347 = vmatprep.subr.mxu0 0.0
    %1348 = vmatpush1.msra.mxu0 0.0
    %1349 = vmatprep.subr.mxu0 0.0
    %1350 = vmatpush1.msra.mxu0 0.0
    %1351 = vmatprep.subr.mxu0 0.0
    %1352 = vmatpush1.msra.mxu0 0.0
    %1353 = vmatprep.subr.mxu0 0.0
    %1354 = vmatpush1.msra.mxu0 0.0
    %1355 = vmatprep.subr.mxu0 0.0
    %1356 = vmatpush1.msra.mxu0 0.0
    %1357 = vmatprep.subr.mxu0 0.0
    %1358 = vmatpush1.msra.mxu0 0.0
    %1359 = vmatprep.subr.mxu0 0.0
    %1360 = vmatpush1.msra.mxu0 0.0
    %1361 = vmatprep.subr.mxu0 0.0
    %1362 = vmatpush1.msra.mxu0 0.0
    %1363 = vmatprep.subr.mxu0 0.0
    %1364 = vmatpush1.msra.mxu0 0.0
    %1365 = vmatprep.subr.mxu0 0.0
    %1366 = vmatpush1.msra.mxu0 0.0
    %1367 = vmatprep.subr.mxu0 0.0
    %1368 = vmatpush1.msra.mxu0 0.0
    %1369 = vmatprep.subr.mxu0 0.0
    %1370 = vmatpush1.msra.mxu0 0.0
    %1371 = vmatprep.subr.mxu0 0.0
    %1372 = vmatpush1.msra.mxu0 0.0
    %1373 = vmatprep.subr.mxu0 0.0
    %1374 = vmatpush1.msra.mxu0 0.0
    %1375 = vmatprep.subr.mxu0 0.0
    %1376 = vmatpush1.msra.mxu0 0.0
    %1377 = vmatprep.subr.mxu0 0.0
    %1378 = vmatpush1.msra.mxu0 0.0
    %1379 = vmatprep.subr.mxu0 0.0
    %1380 = vmatpush1.msra.mxu0 0.0
    %1381 = vmatprep.subr.mxu0 0.0
    %1382 = vmatpush1.msra.mxu0 0.0
    %1383 = vmatprep.subr.mxu0 0.0
    %1384 = vmatpush1.msra.mxu0 0.0
    %1385 = vmatprep.subr.mxu0 0.0
    %1386 = vmatpush1.msra.mxu0 0.0
    %1387 = vmatprep.subr.mxu0 0.0
    %1388 = vmatpush1.msra.mxu0 0.0
    %1389 = vmatprep.subr.mxu0 0.0
    %1390 = vmatpush1.msra.mxu0 0.0
    %1391 = vmatprep.subr.mxu0 0.0
    %1392 = vmatpush1.msra.mxu0 0.0
    %1393 = vmatprep.subr.mxu0 0.0
    %1394 = vmatpush1.msra.mxu0 0.0
    %1395 = vmatprep.subr.mxu0 0.0
    %1396 = vmatpush1.msra.mxu0 0.0
    %1397 = vmatprep.subr.mxu0 0.0
    %1398 = vmatpush1.msra.mxu0 0.0
    %1399 = vmatprep.subr.mxu0 0.0
    %1400 = vmatpush1.msra.mxu0 0.0
    %1401 = vmatprep.subr.mxu0 0.0
    %1402 = vmatpush1.msra.mxu0 0.0
    %1403 = vmatprep.subr.mxu0 0.0
    %1404 = vmatpush1.msra.mxu0 0.0
    %1405 = vmatprep.subr.mxu0 0.0
    %1406 = vmatpush1.msra.mxu0 0.0
    %1407 = vmatprep.subr.mxu0 0.0
    %1408 = vmatpush1.msra.mxu0 0.0
    %1409 = vmatprep.mubr.f32.mxu0 0.0
    %1410 = vmatmul.mubr.f32.gmra.mrb[0].mxu0 %v1343
    %v1411 = vpop.f32.mrb[0].mxu0
    %v1412 = vadd.f32 0.0, %v1411
    %v1413 = vpop.f32.mrb[0].mxu0
    %1414 = vdwg.mxu0
    %1415 = vrot.lane.b32.xlu0 %v211, 112
    %v1416 = vpop.permute.xlu0 %1415
    %v1419 = vsel %vm637, %v1326, 0
    %1421 = vmatprep.subr.mxu0 0.0
    %1422 = vmatpush1.msra.mxu0 %v1416
    %1423 = vmatprep.subr.mxu0 0.0
    %1424 = vmatpush1.msra.mxu0 0.0
    %1425 = vmatprep.subr.mxu0 0.0
    %1426 = vmatpush1.msra.mxu0 0.0
    %1427 = vmatprep.subr.mxu0 0.0
    %1428 = vmatpush1.msra.mxu0 0.0
    %1429 = vmatprep.subr.mxu0 0.0
    %1430 = vmatpush1.msra.mxu0 0.0
    %1431 = vmatprep.subr.mxu0 0.0
    %1432 = vmatpush1.msra.mxu0 0.0
    %1433 = vmatprep.subr.mxu0 0.0
    %1434 = vmatpush1.msra.mxu0 0.0
    %1435 = vmatprep.subr.mxu0 0.0
    %1436 = vmatpush1.msra.mxu0 0.0
    %1437 = vmatprep.subr.mxu0 0.0
    %1438 = vmatpush1.msra.mxu0 0.0
    %1439 = vmatprep.subr.mxu0 0.0
    %1440 = vmatpush1.msra.mxu0 0.0
    %1441 = vmatprep.subr.mxu0 0.0
    %1442 = vmatpush1.msra.mxu0 0.0
    %1443 = vmatprep.subr.mxu0 0.0
    %1444 = vmatpush1.msra.mxu0 0.0
    %1445 = vmatprep.subr.mxu0 0.0
    %1446 = vmatpush1.msra.mxu0 0.0
    %1447 = vmatprep.subr.mxu0 0.0
    %1448 = vmatpush1.msra.mxu0 0.0
    %1449 = vmatprep.subr.mxu0 0.0
    %1450 = vmatpush1.msra.mxu0 0.0
    %1451 = vmatprep.subr.mxu0 0.0
    %1452 = vmatpush1.msra.mxu0 0.0
    %1453 = vmatprep.subr.mxu0 0.0
    %1454 = vmatpush1.msra.mxu0 0.0
    %1455 = vmatprep.subr.mxu0 0.0
    %1456 = vmatpush1.msra.mxu0 0.0
    %1457 = vmatprep.subr.mxu0 0.0
    %1458 = vmatpush1.msra.mxu0 0.0
    %1459 = vmatprep.subr.mxu0 0.0
    %1460 = vmatpush1.msra.mxu0 0.0
    %1461 = vmatprep.subr.mxu0 0.0
    %1462 = vmatpush1.msra.mxu0 0.0
    %1463 = vmatprep.subr.mxu0 0.0
    %1464 = vmatpush1.msra.mxu0 0.0
    %1465 = vmatprep.subr.mxu0 0.0
    %1466 = vmatpush1.msra.mxu0 0.0
    %1467 = vmatprep.subr.mxu0 0.0
    %1468 = vmatpush1.msra.mxu0 0.0
    %1469 = vmatprep.subr.mxu0 0.0
    %1470 = vmatpush1.msra.mxu0 0.0
    %1471 = vmatprep.subr.mxu0 0.0
    %1472 = vmatpush1.msra.mxu0 0.0
    %1473 = vmatprep.subr.mxu0 0.0
    %1474 = vmatpush1.msra.mxu0 0.0
    %1475 = vmatprep.subr.mxu0 0.0
    %1476 = vmatpush1.msra.mxu0 0.0
    %1477 = vmatprep.subr.mxu0 0.0
    %1478 = vmatpush1.msra.mxu0 0.0
    %1479 = vmatprep.subr.mxu0 0.0
    %1480 = vmatpush1.msra.mxu0 0.0
    %1481 = vmatprep.subr.mxu0 0.0
    %1482 = vmatpush1.msra.mxu0 0.0
    %1483 = vmatprep.subr.mxu0 0.0
    %1484 = vmatpush1.msra.mxu0 0.0
    %1485 = vmatprep.mubr.f32.mxu0 0.0
    %1486 = vmatmul.mubr.f32.gmra.mrb[0].mxu0 %v1419
    %v1487 = vpop.f32.mrb[0].mxu0
    %v1488 = vadd.f32 0.0, %v1487
    %v1489 = vpop.f32.mrb[0].mxu0
    %1490 = vdwg.mxu0
    %1491 = vrot.lane.b32.xlu0 %v281, 112
    %v1492 = vpop.permute.xlu0 %1491
    %v1495 = vsel %vm637, %v1328, 0
    %1497 = vmatprep.subr.mxu0 0.0
    %1498 = vmatpush1.msra.mxu0 %v1492
    %1499 = vmatprep.subr.mxu0 0.0
    %1500 = vmatpush1.msra.mxu0 0.0
    %1501 = vmatprep.subr.mxu0 0.0
    %1502 = vmatpush1.msra.mxu0 0.0
    %1503 = vmatprep.subr.mxu0 0.0
    %1504 = vmatpush1.msra.mxu0 0.0
    %1505 = vmatprep.subr.mxu0 0.0
    %1506 = vmatpush1.msra.mxu0 0.0
    %1507 = vmatprep.subr.mxu0 0.0
    %1508 = vmatpush1.msra.mxu0 0.0
    %1509 = vmatprep.subr.mxu0 0.0
    %1510 = vmatpush1.msra.mxu0 0.0
    %1511 = vmatprep.subr.mxu0 0.0
    %1512 = vmatpush1.msra.mxu0 0.0
    %1513 = vmatprep.subr.mxu0 0.0
    %1514 = vmatpush1.msra.mxu0 0.0
    %1515 = vmatprep.subr.mxu0 0.0
    %1516 = vmatpush1.msra.mxu0 0.0
    %1517 = vmatprep.subr.mxu0 0.0
    %1518 = vmatpush1.msra.mxu0 0.0
    %1519 = vmatprep.subr.mxu0 0.0
    %1520 = vmatpush1.msra.mxu0 0.0
    %1521 = vmatprep.subr.mxu0 0.0
    %1522 = vmatpush1.msra.mxu0 0.0
    %1523 = vmatprep.subr.mxu0 0.0
    %1524 = vmatpush1.msra.mxu0 0.0
    %1525 = vmatprep.subr.mxu0 0.0
    %1526 = vmatpush1.msra.mxu0 0.0
    %1527 = vmatprep.subr.mxu0 0.0
    %1528 = vmatpush1.msra.mxu0 0.0
    %1529 = vmatprep.subr.mxu0 0.0
    %1530 = vmatpush1.msra.mxu0 0.0
    %1531 = vmatprep.subr.mxu0 0.0
    %1532 = vmatpush1.msra.mxu0 0.0
    %1533 = vmatprep.subr.mxu0 0.0
    %1534 = vmatpush1.msra.mxu0 0.0
    %1535 = vmatprep.subr.mxu0 0.0
    %1536 = vmatpush1.msra.mxu0 0.0
    %1537 = vmatprep.subr.mxu0 0.0
    %1538 = vmatpush1.msra.mxu0 0.0
    %1539 = vmatprep.subr.mxu0 0.0
    %1540 = vmatpush1.msra.mxu0 0.0
    %1541 = vmatprep.subr.mxu0 0.0
    %1542 = vmatpush1.msra.mxu0 0.0
    %1543 = vmatprep.subr.mxu0 0.0
    %1544 = vmatpush1.msra.mxu0 0.0
    %1545 = vmatprep.subr.mxu0 0.0
    %1546 = vmatpush1.msra.mxu0 0.0
    %1547 = vmatprep.subr.mxu0 0.0
    %1548 = vmatpush1.msra.mxu0 0.0
    %1549 = vmatprep.subr.mxu0 0.0
    %1550 = vmatpush1.msra.mxu0 0.0
    %1551 = vmatprep.subr.mxu0 0.0
    %1552 = vmatpush1.msra.mxu0 0.0
    %1553 = vmatprep.subr.mxu0 0.0
    %1554 = vmatpush1.msra.mxu0 0.0
    %1555 = vmatprep.subr.mxu0 0.0
    %1556 = vmatpush1.msra.mxu0 0.0
    %1557 = vmatprep.subr.mxu0 0.0
    %1558 = vmatpush1.msra.mxu0 0.0
    %1559 = vmatprep.subr.mxu0 0.0
    %1560 = vmatpush1.msra.mxu0 0.0
    %1561 = vmatprep.mubr.f32.mxu0 0.0
    %1562 = vmatmul.mubr.f32.gmra.mrb[0].mxu0 %v1495
    %v1563 = vpop.f32.mrb[0].mxu0
    %v1564 = vadd.f32 0.0, %v1563
    %v1565 = vpop.f32.mrb[0].mxu0
    %1566 = vdwg.mxu0
    %1567 = vrot.lane.b32.xlu0 %v351, 112
    %v1568 = vpop.permute.xlu0 %1567
    %v1571 = vsel %vm637, %v1330, 0
    %1573 = vmatprep.subr.mxu0 0.0
    %1574 = vmatpush1.msra.mxu0 %v1568
    %1575 = vmatprep.subr.mxu0 0.0
    %1576 = vmatpush1.msra.mxu0 0.0
    %1577 = vmatprep.subr.mxu0 0.0
    %1578 = vmatpush1.msra.mxu0 0.0
    %1579 = vmatprep.subr.mxu0 0.0
    %1580 = vmatpush1.msra.mxu0 0.0
    %1581 = vmatprep.subr.mxu0 0.0
    %1582 = vmatpush1.msra.mxu0 0.0
    %1583 = vmatprep.subr.mxu0 0.0
    %1584 = vmatpush1.msra.mxu0 0.0
    %1585 = vmatprep.subr.mxu0 0.0
    %1586 = vmatpush1.msra.mxu0 0.0
    %1587 = vmatprep.subr.mxu0 0.0
    %1588 = vmatpush1.msra.mxu0 0.0
    %1589 = vmatprep.subr.mxu0 0.0
    %1590 = vmatpush1.msra.mxu0 0.0
    %1591 = vmatprep.subr.mxu0 0.0
    %1592 = vmatpush1.msra.mxu0 0.0
    %1593 = vmatprep.subr.mxu0 0.0
    %1594 = vmatpush1.msra.mxu0 0.0
    %1595 = vmatprep.subr.mxu0 0.0
    %1596 = vmatpush1.msra.mxu0 0.0
    %1597 = vmatprep.subr.mxu0 0.0
    %1598 = vmatpush1.msra.mxu0 0.0
    %1599 = vmatprep.subr.mxu0 0.0
    %1600 = vmatpush1.msra.mxu0 0.0
    %1601 = vmatprep.subr.mxu0 0.0
    %1602 = vmatpush1.msra.mxu0 0.0
    %1603 = vmatprep.subr.mxu0 0.0
    %1604 = vmatpush1.msra.mxu0 0.0
    %1605 = vmatprep.subr.mxu0 0.0
    %1606 = vmatpush1.msra.mxu0 0.0
    %1607 = vmatprep.subr.mxu0 0.0
    %1608 = vmatpush1.msra.mxu0 0.0
    %1609 = vmatprep.subr.mxu0 0.0
    %1610 = vmatpush1.msra.mxu0 0.0
    %1611 = vmatprep.subr.mxu0 0.0
    %1612 = vmatpush1.msra.mxu0 0.0
    %1613 = vmatprep.subr.mxu0 0.0
    %1614 = vmatpush1.msra.mxu0 0.0
    %1615 = vmatprep.subr.mxu0 0.0
    %1616 = vmatpush1.msra.mxu0 0.0
    %1617 = vmatprep.subr.mxu0 0.0
    %1618 = vmatpush1.msra.mxu0 0.0
    %1619 = vmatprep.subr.mxu0 0.0
    %1620 = vmatpush1.msra.mxu0 0.0
    %1621 = vmatprep.subr.mxu0 0.0
    %1622 = vmatpush1.msra.mxu0 0.0
    %1623 = vmatprep.subr.mxu0 0.0
    %1624 = vmatpush1.msra.mxu0 0.0
    %1625 = vmatprep.subr.mxu0 0.0
    %1626 = vmatpush1.msra.mxu0 0.0
    %1627 = vmatprep.subr.mxu0 0.0
    %1628 = vmatpush1.msra.mxu0 0.0
    %1629 = vmatprep.subr.mxu0 0.0
    %1630 = vmatpush1.msra.mxu0 0.0
    %1631 = vmatprep.subr.mxu0 0.0
    %1632 = vmatpush1.msra.mxu0 0.0
    %1633 = vmatprep.subr.mxu0 0.0
    %1634 = vmatpush1.msra.mxu0 0.0
    %1635 = vmatprep.subr.mxu0 0.0
    %1636 = vmatpush1.msra.mxu0 0.0
    %1637 = vmatprep.mubr.f32.mxu0 0.0
    %1638 = vmatmul.mubr.f32.gmra.mrb[0].mxu0 %v1571
    %v1639 = vpop.f32.mrb[0].mxu0
    %v1640 = vadd.f32 0.0, %v1639
    %v1641 = vpop.f32.mrb[0].mxu0
    %1642 = vdwg.mxu0
    %1643 = vrot.lane.b32.xlu0 %v421, 112
    %v1644 = vpop.permute.xlu0 %1643
    %v1647 = vsel %vm637, %v1332, 0
    %1649 = vmatprep.subr.mxu0 0.0
    %1650 = vmatpush1.msra.mxu0 %v1644
    %1651 = vmatprep.subr.mxu0 0.0
    %1652 = vmatpush1.msra.mxu0 0.0
    %1653 = vmatprep.subr.mxu0 0.0
    %1654 = vmatpush1.msra.mxu0 0.0
    %1655 = vmatprep.subr.mxu0 0.0
    %1656 = vmatpush1.msra.mxu0 0.0
    %1657 = vmatprep.subr.mxu0 0.0
    %1658 = vmatpush1.msra.mxu0 0.0
    %1659 = vmatprep.subr.mxu0 0.0
    %1660 = vmatpush1.msra.mxu0 0.0
    %1661 = vmatprep.subr.mxu0 0.0
    %1662 = vmatpush1.msra.mxu0 0.0
    %1663 = vmatprep.subr.mxu0 0.0
    %1664 = vmatpush1.msra.mxu0 0.0
    %1665 = vmatprep.subr.mxu0 0.0
    %1666 = vmatpush1.msra.mxu0 0.0
    %1667 = vmatprep.subr.mxu0 0.0
    %1668 = vmatpush1.msra.mxu0 0.0
    %1669 = vmatprep.subr.mxu0 0.0
    %1670 = vmatpush1.msra.mxu0 0.0
    %1671 = vmatprep.subr.mxu0 0.0
    %1672 = vmatpush1.msra.mxu0 0.0
    %1673 = vmatprep.subr.mxu0 0.0
    %1674 = vmatpush1.msra.mxu0 0.0
    %1675 = vmatprep.subr.mxu0 0.0
    %1676 = vmatpush1.msra.mxu0 0.0
    %1677 = vmatprep.subr.mxu0 0.0
    %1678 = vmatpush1.msra.mxu0 0.0
    %1679 = vmatprep.subr.mxu0 0.0
    %1680 = vmatpush1.msra.mxu0 0.0
    %1681 = vmatprep.subr.mxu0 0.0
    %1682 = vmatpush1.msra.mxu0 0.0
    %1683 = vmatprep.subr.mxu0 0.0
    %1684 = vmatpush1.msra.mxu0 0.0
    %1685 = vmatprep.subr.mxu0 0.0
    %1686 = vmatpush1.msra.mxu0 0.0
    %1687 = vmatprep.subr.mxu0 0.0
    %1688 = vmatpush1.msra.mxu0 0.0
    %1689 = vmatprep.subr.mxu0 0.0
    %1690 = vmatpush1.msra.mxu0 0.0
    %1691 = vmatprep.subr.mxu0 0.0
    %1692 = vmatpush1.msra.mxu0 0.0
    %1693 = vmatprep.subr.mxu0 0.0
    %1694 = vmatpush1.msra.mxu0 0.0
    %1695 = vmatprep.subr.mxu0 0.0
    %1696 = vmatpush1.msra.mxu0 0.0
    %1697 = vmatprep.subr.mxu0 0.0
    %1698 = vmatpush1.msra.mxu0 0.0
    %1699 = vmatprep.subr.mxu0 0.0
    %1700 = vmatpush1.msra.mxu0 0.0
    %1701 = vmatprep.subr.mxu0 0.0
    %1702 = vmatpush1.msra.mxu0 0.0
    %1703 = vmatprep.subr.mxu0 0.0
    %1704 = vmatpush1.msra.mxu0 0.0
    %1705 = vmatprep.subr.mxu0 0.0
    %1706 = vmatpush1.msra.mxu0 0.0
    %1707 = vmatprep.subr.mxu0 0.0
    %1708 = vmatpush1.msra.mxu0 0.0
    %1709 = vmatprep.subr.mxu0 0.0
    %1710 = vmatpush1.msra.mxu0 0.0
    %1711 = vmatprep.subr.mxu0 0.0
    %1712 = vmatpush1.msra.mxu0 0.0
    %1713 = vmatprep.mubr.f32.mxu0 0.0
    %1714 = vmatmul.mubr.f32.gmra.mrb[0].mxu0 %v1647
    %v1715 = vpop.f32.mrb[0].mxu0
    %v1716 = vadd.f32 0.0, %v1715
    %v1717 = vpop.f32.mrb[0].mxu0
    %1718 = vdwg.mxu0
    %1719 = vrot.lane.b32.xlu0 %v491, 112
    %v1720 = vpop.permute.xlu0 %1719
    %v1723 = vsel %vm637, %v1334, 0
    %1725 = vmatprep.subr.mxu0 0.0
    %1726 = vmatpush1.msra.mxu0 %v1720
    %1727 = vmatprep.subr.mxu0 0.0
    %1728 = vmatpush1.msra.mxu0 0.0
    %1729 = vmatprep.subr.mxu0 0.0
    %1730 = vmatpush1.msra.mxu0 0.0
    %1731 = vmatprep.subr.mxu0 0.0
    %1732 = vmatpush1.msra.mxu0 0.0
    %1733 = vmatprep.subr.mxu0 0.0
    %1734 = vmatpush1.msra.mxu0 0.0
    %1735 = vmatprep.subr.mxu0 0.0
    %1736 = vmatpush1.msra.mxu0 0.0
    %1737 = vmatprep.subr.mxu0 0.0
    %1738 = vmatpush1.msra.mxu0 0.0
    %1739 = vmatprep.subr.mxu0 0.0
    %1740 = vmatpush1.msra.mxu0 0.0
    %1741 = vmatprep.subr.mxu0 0.0
    %1742 = vmatpush1.msra.mxu0 0.0
    %1743 = vmatprep.subr.mxu0 0.0
    %1744 = vmatpush1.msra.mxu0 0.0
    %1745 = vmatprep.subr.mxu0 0.0
    %1746 = vmatpush1.msra.mxu0 0.0
    %1747 = vmatprep.subr.mxu0 0.0
    %1748 = vmatpush1.msra.mxu0 0.0
    %1749 = vmatprep.subr.mxu0 0.0
    %1750 = vmatpush1.msra.mxu0 0.0
    %1751 = vmatprep.subr.mxu0 0.0
    %1752 = vmatpush1.msra.mxu0 0.0
    %1753 = vmatprep.subr.mxu0 0.0
    %1754 = vmatpush1.msra.mxu0 0.0
    %1755 = vmatprep.subr.mxu0 0.0
    %1756 = vmatpush1.msra.mxu0 0.0
    %1757 = vmatprep.subr.mxu0 0.0
    %1758 = vmatpush1.msra.mxu0 0.0
    %1759 = vmatprep.subr.mxu0 0.0
    %1760 = vmatpush1.msra.mxu0 0.0
    %1761 = vmatprep.subr.mxu0 0.0
    %1762 = vmatpush1.msra.mxu0 0.0
    %1763 = vmatprep.subr.mxu0 0.0
    %1764 = vmatpush1.msra.mxu0 0.0
    %1765 = vmatprep.subr.mxu0 0.0
    %1766 = vmatpush1.msra.mxu0 0.0
    %1767 = vmatprep.subr.mxu0 0.0
    %1768 = vmatpush1.msra.mxu0 0.0
    %1769 = vmatprep.subr.mxu0 0.0
    %1770 = vmatpush1.msra.mxu0 0.0
    %1771 = vmatprep.subr.mxu0 0.0
    %1772 = vmatpush1.msra.mxu0 0.0
    %1773 = vmatprep.subr.mxu0 0.0
    %1774 = vmatpush1.msra.mxu0 0.0
    %1775 = vmatprep.subr.mxu0 0.0
    %1776 = vmatpush1.msra.mxu0 0.0
    %1777 = vmatprep.subr.mxu0 0.0
    %1778 = vmatpush1.msra.mxu0 0.0
    %1779 = vmatprep.subr.mxu0 0.0
    %1780 = vmatpush1.msra.mxu0 0.0
    %1781 = vmatprep.subr.mxu0 0.0
    %1782 = vmatpush1.msra.mxu0 0.0
    %1783 = vmatprep.subr.mxu0 0.0
    %1784 = vmatpush1.msra.mxu0 0.0
    %1785 = vmatprep.subr.mxu0 0.0
    %1786 = vmatpush1.msra.mxu0 0.0
    %1787 = vmatprep.subr.mxu0 0.0
    %1788 = vmatpush1.msra.mxu0 0.0
    %1789 = vmatprep.mubr.f32.mxu0 0.0
    %1790 = vmatmul.mubr.f32.gmra.mrb[0].mxu0 %v1723
    %v1791 = vpop.f32.mrb[0].mxu0
    %v1792 = vadd.f32 0.0, %v1791
    %v1793 = vpop.f32.mrb[0].mxu0
    %1794 = vdwg.mxu0
    %1795 = vrot.lane.b32.xlu0 %v561, 112
    %v1796 = vpop.permute.xlu0 %1795
    %v1799 = vsel %vm637, %v1336, 0
    %1801 = vmatprep.subr.mxu0 0.0
    %1802 = vmatpush1.msra.mxu0 %v1796
    %1803 = vmatprep.subr.mxu0 0.0
    %1804 = vmatpush1.msra.mxu0 0.0
    %1805 = vmatprep.subr.mxu0 0.0
    %1806 = vmatpush1.msra.mxu0 0.0
    %1807 = vmatprep.subr.mxu0 0.0
    %1808 = vmatpush1.msra.mxu0 0.0
    %1809 = vmatprep.subr.mxu0 0.0
    %1810 = vmatpush1.msra.mxu0 0.0
    %1811 = vmatprep.subr.mxu0 0.0
    %1812 = vmatpush1.msra.mxu0 0.0
    %1813 = vmatprep.subr.mxu0 0.0
    %1814 = vmatpush1.msra.mxu0 0.0
    %1815 = vmatprep.subr.mxu0 0.0
    %1816 = vmatpush1.msra.mxu0 0.0
    %1817 = vmatprep.subr.mxu0 0.0
    %1818 = vmatpush1.msra.mxu0 0.0
    %1819 = vmatprep.subr.mxu0 0.0
    %1820 = vmatpush1.msra.mxu0 0.0
    %1821 = vmatprep.subr.mxu0 0.0
    %1822 = vmatpush1.msra.mxu0 0.0
    %1823 = vmatprep.subr.mxu0 0.0
    %1824 = vmatpush1.msra.mxu0 0.0
    %1825 = vmatprep.subr.mxu0 0.0
    %1826 = vmatpush1.msra.mxu0 0.0
    %1827 = vmatprep.subr.mxu0 0.0
    %1828 = vmatpush1.msra.mxu0 0.0
    %1829 = vmatprep.subr.mxu0 0.0
    %1830 = vmatpush1.msra.mxu0 0.0
    %1831 = vmatprep.subr.mxu0 0.0
    %1832 = vmatpush1.msra.mxu0 0.0
    %1833 = vmatprep.subr.mxu0 0.0
    %1834 = vmatpush1.msra.mxu0 0.0
    %1835 = vmatprep.subr.mxu0 0.0
    %1836 = vmatpush1.msra.mxu0 0.0
    %1837 = vmatprep.subr.mxu0 0.0
    %1838 = vmatpush1.msra.mxu0 0.0
    %1839 = vmatprep.subr.mxu0 0.0
    %1840 = vmatpush1.msra.mxu0 0.0
    %1841 = vmatprep.subr.mxu0 0.0
    %1842 = vmatpush1.msra.mxu0 0.0
    %1843 = vmatprep.subr.mxu0 0.0
    %1844 = vmatpush1.msra.mxu0 0.0
    %1845 = vmatprep.subr.mxu0 0.0
    %1846 = vmatpush1.msra.mxu0 0.0
    %1847 = vmatprep.subr.mxu0 0.0
    %1848 = vmatpush1.msra.mxu0 0.0
    %1849 = vmatprep.subr.mxu0 0.0
    %1850 = vmatpush1.msra.mxu0 0.0
    %1851 = vmatprep.subr.mxu0 0.0
    %1852 = vmatpush1.msra.mxu0 0.0
    %1853 = vmatprep.subr.mxu0 0.0
    %1854 = vmatpush1.msra.mxu0 0.0
    %1855 = vmatprep.subr.mxu0 0.0
    %1856 = vmatpush1.msra.mxu0 0.0
    %1857 = vmatprep.subr.mxu0 0.0
    %1858 = vmatpush1.msra.mxu0 0.0
    %1859 = vmatprep.subr.mxu0 0.0
    %1860 = vmatpush1.msra.mxu0 0.0
    %1861 = vmatprep.subr.mxu0 0.0
    %1862 = vmatpush1.msra.mxu0 0.0
    %1863 = vmatprep.subr.mxu0 0.0
    %1864 = vmatpush1.msra.mxu0 0.0
    %1865 = vmatprep.mubr.f32.mxu0 0.0
    %1866 = vmatmul.mubr.f32.gmra.mrb[0].mxu0 %v1799
    %v1867 = vpop.f32.mrb[0].mxu0
    %v1868 = vadd.f32 0.0, %v1867
    %v1869 = vpop.f32.mrb[0].mxu0
    %1870 = vdwg.mxu0
    %1871 = vrot.lane.b32.xlu0 %v631, 112
    %v1872 = vpop.permute.xlu0 %1871
    %v1875 = vsel %vm637, %v1338, 0
    %1877 = vmatprep.subr.mxu0 0.0
    %1878 = vmatpush1.msra.mxu0 %v1872
    %1879 = vmatprep.subr.mxu0 0.0
    %1880 = vmatpush1.msra.mxu0 0.0
    %1881 = vmatprep.subr.mxu0 0.0
    %1882 = vmatpush1.msra.mxu0 0.0
    %1883 = vmatprep.subr.mxu0 0.0
    %1884 = vmatpush1.msra.mxu0 0.0
    %1885 = vmatprep.subr.mxu0 0.0
    %1886 = vmatpush1.msra.mxu0 0.0
    %1887 = vmatprep.subr.mxu0 0.0
    %1888 = vmatpush1.msra.mxu0 0.0
    %1889 = vmatprep.subr.mxu0 0.0
    %1890 = vmatpush1.msra.mxu0 0.0
    %1891 = vmatprep.subr.mxu0 0.0
    %1892 = vmatpush1.msra.mxu0 0.0
    %1893 = vmatprep.subr.mxu0 0.0
    %1894 = vmatpush1.msra.mxu0 0.0
    %1895 = vmatprep.subr.mxu0 0.0
    %1896 = vmatpush1.msra.mxu0 0.0
    %1897 = vmatprep.subr.mxu0 0.0
    %1898 = vmatpush1.msra.mxu0 0.0
    %1899 = vmatprep.subr.mxu0 0.0
    %1900 = vmatpush1.msra.mxu0 0.0
    %1901 = vmatprep.subr.mxu0 0.0
    %1902 = vmatpush1.msra.mxu0 0.0
    %1903 = vmatprep.subr.mxu0 0.0
    %1904 = vmatpush1.msra.mxu0 0.0
    %1905 = vmatprep.subr.mxu0 0.0
    %1906 = vmatpush1.msra.mxu0 0.0
    %1907 = vmatprep.subr.mxu0 0.0
    %1908 = vmatpush1.msra.mxu0 0.0
    %1909 = vmatprep.subr.mxu0 0.0
    %1910 = vmatpush1.msra.mxu0 0.0
    %1911 = vmatprep.subr.mxu0 0.0
    %1912 = vmatpush1.msra.mxu0 0.0
    %1913 = vmatprep.subr.mxu0 0.0
    %1914 = vmatpush1.msra.mxu0 0.0
    %1915 = vmatprep.subr.mxu0 0.0
    %1916 = vmatpush1.msra.mxu0 0.0
    %1917 = vmatprep.subr.mxu0 0.0
    %1918 = vmatpush1.msra.mxu0 0.0
    %1919 = vmatprep.subr.mxu0 0.0
    %1920 = vmatpush1.msra.mxu0 0.0
    %1921 = vmatprep.subr.mxu0 0.0
    %1922 = vmatpush1.msra.mxu0 0.0
    %1923 = vmatprep.subr.mxu0 0.0
    %1924 = vmatpush1.msra.mxu0 0.0
    %1925 = vmatprep.subr.mxu0 0.0
    %1926 = vmatpush1.msra.mxu0 0.0
    %1927 = vmatprep.subr.mxu0 0.0
    %1928 = vmatpush1.msra.mxu0 0.0
    %1929 = vmatprep.subr.mxu0 0.0
    %1930 = vmatpush1.msra.mxu0 0.0
    %1931 = vmatprep.subr.mxu0 0.0
    %1932 = vmatpush1.msra.mxu0 0.0
    %1933 = vmatprep.subr.mxu0 0.0
    %1934 = vmatpush1.msra.mxu0 0.0
    %1935 = vmatprep.subr.mxu0 0.0
    %1936 = vmatpush1.msra.mxu0 0.0
    %1937 = vmatprep.subr.mxu0 0.0
    %1938 = vmatpush1.msra.mxu0 0.0
    %1939 = vmatprep.subr.mxu0 0.0
    %1940 = vmatpush1.msra.mxu0 0.0
    %1941 = vmatprep.mubr.f32.mxu0 0.0
    %1942 = vmatmul.mubr.f32.gmra.mrb[0].mxu0 %v1875
    %v1943 = vpop.f32.mrb[0].mxu0
    %v1944 = vadd.f32 0.0, %v1943
    %v1945 = vpop.f32.mrb[0].mxu0
    %1946 = vdwg.mxu0
    %v1947 = vld [vmem:[%s3] sm:$0xff]
    %v1948 = vld [vmem:[%s3 + $0x8] sm:$0xff]
    %v1949 = vld [vmem:[%s3 + $0x10] sm:$0xff]
    %v1950 = vld [vmem:[%s3 + $0x18] sm:$0xff]
    %v1952 = vsel %vm637, %v1412, 0
    %1954 = vmatprep.subr.mxu0 0.0
    %1955 = vmatpush1.msra.mxu0 %v1947
    %1956 = vmatprep.subr.mxu0 0.0
    %1957 = vmatpush1.msra.mxu0 0.0
    %1958 = vmatprep.subr.mxu0 0.0
    %1959 = vmatpush1.msra.mxu0 0.0
    %1960 = vmatprep.subr.mxu0 0.0
    %1961 = vmatpush1.msra.mxu0 0.0
    %1962 = vmatprep.subr.mxu0 0.0
    %1963 = vmatpush1.msra.mxu0 0.0
    %1964 = vmatprep.subr.mxu0 0.0
    %1965 = vmatpush1.msra.mxu0 0.0
    %1966 = vmatprep.subr.mxu0 0.0
    %1967 = vmatpush1.msra.mxu0 0.0
    %1968 = vmatprep.subr.mxu0 0.0
    %1969 = vmatpush1.msra.mxu0 0.0
    %1970 = vmatprep.subr.mxu0 0.0
    %1971 = vmatpush1.msra.mxu0 0.0
    %1972 = vmatprep.subr.mxu0 0.0
    %1973 = vmatpush1.msra.mxu0 0.0
    %1974 = vmatprep.subr.mxu0 0.0
    %1975 = vmatpush1.msra.mxu0 0.0
    %1976 = vmatprep.subr.mxu0 0.0
    %1977 = vmatpush1.msra.mxu0 0.0
    %1978 = vmatprep.subr.mxu0 0.0
    %1979 = vmatpush1.msra.mxu0 0.0
    %1980 = vmatprep.subr.mxu0 0.0
    %1981 = vmatpush1.msra.mxu0 0.0
    %1982 = vmatprep.subr.mxu0 0.0
    %1983 = vmatpush1.msra.mxu0 0.0
    %1984 = vmatprep.subr.mxu0 0.0
    %1985 = vmatpush1.msra.mxu0 0.0
    %1986 = vmatprep.subr.mxu0 0.0
    %1987 = vmatpush1.msra.mxu0 0.0
    %1988 = vmatprep.subr.mxu0 0.0
    %1989 = vmatpush1.msra.mxu0 0.0
    %1990 = vmatprep.subr.mxu0 0.0
    %1991 = vmatpush1.msra.mxu0 0.0
    %1992 = vmatprep.subr.mxu0 0.0
    %1993 = vmatpush1.msra.mxu0 0.0
    %1994 = vmatprep.subr.mxu0 0.0
    %1995 = vmatpush1.msra.mxu0 0.0
    %1996 = vmatprep.subr.mxu0 0.0
    %1997 = vmatpush1.msra.mxu0 0.0
    %1998 = vmatprep.subr.mxu0 0.0
    %1999 = vmatpush1.msra.mxu0 0.0
    %2000 = vmatprep.subr.mxu0 0.0
    %2001 = vmatpush1.msra.mxu0 0.0
    %2002 = vmatprep.subr.mxu0 0.0
    %2003 = vmatpush1.msra.mxu0 0.0
    %2004 = vmatprep.subr.mxu0 0.0
    %2005 = vmatpush1.msra.mxu0 0.0
    %2006 = vmatprep.subr.mxu0 0.0
    %2007 = vmatpush1.msra.mxu0 0.0
    %2008 = vmatprep.subr.mxu0 0.0
    %2009 = vmatpush1.msra.mxu0 0.0
    %2010 = vmatprep.subr.mxu0 0.0
    %2011 = vmatpush1.msra.mxu0 0.0
    %2012 = vmatprep.subr.mxu0 0.0
    %2013 = vmatpush1.msra.mxu0 0.0
    %2014 = vmatprep.subr.mxu0 0.0
    %2015 = vmatpush1.msra.mxu0 0.0
    %2016 = vmatprep.subr.mxu0 0.0
    %2017 = vmatpush1.msra.mxu0 0.0
    %2018 = vmatprep.mubr.f32.mxu0 0.0
    %2019 = vmatmul.mubr.f32.gmra.mrb[0].mxu0 %v1952
    %v2020 = vpop.f32.mrb[0].mxu0
    %v2021 = vadd.f32 0.0, %v2020
    %v2022 = vpop.f32.mrb[0].mxu0
    %2023 = vdwg.mxu0
    %v2025 = vsel %vm637, %v1488, 0
    %2027 = vmatprep.subr.mxu0 0.0
    %2028 = vmatpush1.msra.mxu0 %v1947
    %2029 = vmatprep.subr.mxu0 0.0
    %2030 = vmatpush1.msra.mxu0 0.0
    %2031 = vmatprep.subr.mxu0 0.0
    %2032 = vmatpush1.msra.mxu0 0.0
    %2033 = vmatprep.subr.mxu0 0.0
    %2034 = vmatpush1.msra.mxu0 0.0
    %2035 = vmatprep.subr.mxu0 0.0
    %2036 = vmatpush1.msra.mxu0 0.0
    %2037 = vmatprep.subr.mxu0 0.0
    %2038 = vmatpush1.msra.mxu0 0.0
    %2039 = vmatprep.subr.mxu0 0.0
    %2040 = vmatpush1.msra.mxu0 0.0
    %2041 = vmatprep.subr.mxu0 0.0
    %2042 = vmatpush1.msra.mxu0 0.0
    %2043 = vmatprep.subr.mxu0 0.0
    %2044 = vmatpush1.msra.mxu0 0.0
    %2045 = vmatprep.subr.mxu0 0.0
    %2046 = vmatpush1.msra.mxu0 0.0
    %2047 = vmatprep.subr.mxu0 0.0
    %2048 = vmatpush1.msra.mxu0 0.0
    %2049 = vmatprep.subr.mxu0 0.0
    %2050 = vmatpush1.msra.mxu0 0.0
    %2051 = vmatprep.subr.mxu0 0.0
    %2052 = vmatpush1.msra.mxu0 0.0
    %2053 = vmatprep.subr.mxu0 0.0
    %2054 = vmatpush1.msra.mxu0 0.0
    %2055 = vmatprep.subr.mxu0 0.0
    %2056 = vmatpush1.msra.mxu0 0.0
    %2057 = vmatprep.subr.mxu0 0.0
    %2058 = vmatpush1.msra.mxu0 0.0
    %2059 = vmatprep.subr.mxu0 0.0
    %2060 = vmatpush1.msra.mxu0 0.0
    %2061 = vmatprep.subr.mxu0 0.0
    %2062 = vmatpush1.msra.mxu0 0.0
    %2063 = vmatprep.subr.mxu0 0.0
    %2064 = vmatpush1.msra.mxu0 0.0
    %2065 = vmatprep.subr.mxu0 0.0
    %2066 = vmatpush1.msra.mxu0 0.0
    %2067 = vmatprep.subr.mxu0 0.0
    %2068 = vmatpush1.msra.mxu0 0.0
    %2069 = vmatprep.subr.mxu0 0.0
    %2070 = vmatpush1.msra.mxu0 0.0
    %2071 = vmatprep.subr.mxu0 0.0
    %2072 = vmatpush1.msra.mxu0 0.0
    %2073 = vmatprep.subr.mxu0 0.0
    %2074 = vmatpush1.msra.mxu0 0.0
    %2075 = vmatprep.subr.mxu0 0.0
    %2076 = vmatpush1.msra.mxu0 0.0
    %2077 = vmatprep.subr.mxu0 0.0
    %2078 = vmatpush1.msra.mxu0 0.0
    %2079 = vmatprep.subr.mxu0 0.0
    %2080 = vmatpush1.msra.mxu0 0.0
    %2081 = vmatprep.subr.mxu0 0.0
    %2082 = vmatpush1.msra.mxu0 0.0
    %2083 = vmatprep.subr.mxu0 0.0
    %2084 = vmatpush1.msra.mxu0 0.0
    %2085 = vmatprep.subr.mxu0 0.0
    %2086 = vmatpush1.msra.mxu0 0.0
    %2087 = vmatprep.subr.mxu0 0.0
    %2088 = vmatpush1.msra.mxu0 0.0
    %2089 = vmatprep.subr.mxu0 0.0
    %2090 = vmatpush1.msra.mxu0 0.0
    %2091 = vmatprep.mubr.f32.mxu0 0.0
    %2092 = vmatmul.mubr.f32.gmra.mrb[0].mxu0 %v2025
    %v2093 = vpop.f32.mrb[0].mxu0
    %v2094 = vadd.f32 0.0, %v2093
    %v2095 = vpop.f32.mrb[0].mxu0
    %2096 = vdwg.mxu0
    %v2098 = vsel %vm637, %v1564, 0
    %2100 = vmatprep.subr.mxu0 0.0
    %2101 = vmatpush1.msra.mxu0 %v1948
    %2102 = vmatprep.subr.mxu0 0.0
    %2103 = vmatpush1.msra.mxu0 0.0
    %2104 = vmatprep.subr.mxu0 0.0
    %2105 = vmatpush1.msra.mxu0 0.0
    %2106 = vmatprep.subr.mxu0 0.0
    %2107 = vmatpush1.msra.mxu0 0.0
    %2108 = vmatprep.subr.mxu0 0.0
    %2109 = vmatpush1.msra.mxu0 0.0
    %2110 = vmatprep.subr.mxu0 0.0
    %2111 = vmatpush1.msra.mxu0 0.0
    %2112 = vmatprep.subr.mxu0 0.0
    %2113 = vmatpush1.msra.mxu0 0.0
    %2114 = vmatprep.subr.mxu0 0.0
    %2115 = vmatpush1.msra.mxu0 0.0
    %2116 = vmatprep.subr.mxu0 0.0
    %2117 = vmatpush1.msra.mxu0 0.0
    %2118 = vmatprep.subr.mxu0 0.0
    %2119 = vmatpush1.msra.mxu0 0.0
    %2120 = vmatprep.subr.mxu0 0.0
    %2121 = vmatpush1.msra.mxu0 0.0
    %2122 = vmatprep.subr.mxu0 0.0
    %2123 = vmatpush1.msra.mxu0 0.0
    %2124 = vmatprep.subr.mxu0 0.0
    %2125 = vmatpush1.msra.mxu0 0.0
    %2126 = vmatprep.subr.mxu0 0.0
    %2127 = vmatpush1.msra.mxu0 0.0
    %2128 = vmatprep.subr.mxu0 0.0
    %2129 = vmatpush1.msra.mxu0 0.0
    %2130 = vmatprep.subr.mxu0 0.0
    %2131 = vmatpush1.msra.mxu0 0.0
    %2132 = vmatprep.subr.mxu0 0.0
    %2133 = vmatpush1.msra.mxu0 0.0
    %2134 = vmatprep.subr.mxu0 0.0
    %2135 = vmatpush1.msra.mxu0 0.0
    %2136 = vmatprep.subr.mxu0 0.0
    %2137 = vmatpush1.msra.mxu0 0.0
    %2138 = vmatprep.subr.mxu0 0.0
    %2139 = vmatpush1.msra.mxu0 0.0
    %2140 = vmatprep.subr.mxu0 0.0
    %2141 = vmatpush1.msra.mxu0 0.0
    %2142 = vmatprep.subr.mxu0 0.0
    %2143 = vmatpush1.msra.mxu0 0.0
    %2144 = vmatprep.subr.mxu0 0.0
    %2145 = vmatpush1.msra.mxu0 0.0
    %2146 = vmatprep.subr.mxu0 0.0
    %2147 = vmatpush1.msra.mxu0 0.0
    %2148 = vmatprep.subr.mxu0 0.0
    %2149 = vmatpush1.msra.mxu0 0.0
    %2150 = vmatprep.subr.mxu0 0.0
    %2151 = vmatpush1.msra.mxu0 0.0
    %2152 = vmatprep.subr.mxu0 0.0
    %2153 = vmatpush1.msra.mxu0 0.0
    %2154 = vmatprep.subr.mxu0 0.0
    %2155 = vmatpush1.msra.mxu0 0.0
    %2156 = vmatprep.subr.mxu0 0.0
    %2157 = vmatpush1.msra.mxu0 0.0
    %2158 = vmatprep.subr.mxu0 0.0
    %2159 = vmatpush1.msra.mxu0 0.0
    %2160 = vmatprep.subr.mxu0 0.0
    %2161 = vmatpush1.msra.mxu0 0.0
    %2162 = vmatprep.subr.mxu0 0.0
    %2163 = vmatpush1.msra.mxu0 0.0
    %2164 = vmatprep.mubr.f32.mxu0 0.0
    %2165 = vmatmul.mubr.f32.gmra.mrb[0].mxu0 %v2098
    %v2166 = vpop.f32.mrb[0].mxu0
    %v2167 = vadd.f32 0.0, %v2166
    %v2168 = vpop.f32.mrb[0].mxu0
    %2169 = vdwg.mxu0
    %v2171 = vsel %vm637, %v1640, 0
    %2173 = vmatprep.subr.mxu0 0.0
    %2174 = vmatpush1.msra.mxu0 %v1948
    %2175 = vmatprep.subr.mxu0 0.0
    %2176 = vmatpush1.msra.mxu0 0.0
    %2177 = vmatprep.subr.mxu0 0.0
    %2178 = vmatpush1.msra.mxu0 0.0
    %2179 = vmatprep.subr.mxu0 0.0
    %2180 = vmatpush1.msra.mxu0 0.0
    %2181 = vmatprep.subr.mxu0 0.0
    %2182 = vmatpush1.msra.mxu0 0.0
    %2183 = vmatprep.subr.mxu0 0.0
    %2184 = vmatpush1.msra.mxu0 0.0
    %2185 = vmatprep.subr.mxu0 0.0
    %2186 = vmatpush1.msra.mxu0 0.0
    %2187 = vmatprep.subr.mxu0 0.0
    %2188 = vmatpush1.msra.mxu0 0.0
    %2189 = vmatprep.subr.mxu0 0.0
    %2190 = vmatpush1.msra.mxu0 0.0
    %2191 = vmatprep.subr.mxu0 0.0
    %2192 = vmatpush1.msra.mxu0 0.0
    %2193 = vmatprep.subr.mxu0 0.0
    %2194 = vmatpush1.msra.mxu0 0.0
    %2195 = vmatprep.subr.mxu0 0.0
    %2196 = vmatpush1.msra.mxu0 0.0
    %2197 = vmatprep.subr.mxu0 0.0
    %2198 = vmatpush1.msra.mxu0 0.0
    %2199 = vmatprep.subr.mxu0 0.0
    %2200 = vmatpush1.msra.mxu0 0.0
    %2201 = vmatprep.subr.mxu0 0.0
    %2202 = vmatpush1.msra.mxu0 0.0
    %2203 = vmatprep.subr.mxu0 0.0
    %2204 = vmatpush1.msra.mxu0 0.0
    %2205 = vmatprep.subr.mxu0 0.0
    %2206 = vmatpush1.msra.mxu0 0.0
    %2207 = vmatprep.subr.mxu0 0.0
    %2208 = vmatpush1.msra.mxu0 0.0
    %2209 = vmatprep.subr.mxu0 0.0
    %2210 = vmatpush1.msra.mxu0 0.0
    %2211 = vmatprep.subr.mxu0 0.0
    %2212 = vmatpush1.msra.mxu0 0.0
    %2213 = vmatprep.subr.mxu0 0.0
    %2214 = vmatpush1.msra.mxu0 0.0
    %2215 = vmatprep.subr.mxu0 0.0
    %2216 = vmatpush1.msra.mxu0 0.0
    %2217 = vmatprep.subr.mxu0 0.0
    %2218 = vmatpush1.msra.mxu0 0.0
    %2219 = vmatprep.subr.mxu0 0.0
    %2220 = vmatpush1.msra.mxu0 0.0
    %2221 = vmatprep.subr.mxu0 0.0
    %2222 = vmatpush1.msra.mxu0 0.0
    %2223 = vmatprep.subr.mxu0 0.0
    %2224 = vmatpush1.msra.mxu0 0.0
    %2225 = vmatprep.subr.mxu0 0.0
    %2226 = vmatpush1.msra.mxu0 0.0
    %2227 = vmatprep.subr.mxu0 0.0
    %2228 = vmatpush1.msra.mxu0 0.0
    %2229 = vmatprep.subr.mxu0 0.0
    %2230 = vmatpush1.msra.mxu0 0.0
    %2231 = vmatprep.subr.mxu0 0.0
    %2232 = vmatpush1.msra.mxu0 0.0
    %2233 = vmatprep.subr.mxu0 0.0
    %2234 = vmatpush1.msra.mxu0 0.0
    %2235 = vmatprep.subr.mxu0 0.0
    %2236 = vmatpush1.msra.mxu0 0.0
    %2237 = vmatprep.mubr.f32.mxu0 0.0
    %2238 = vmatmul.mubr.f32.gmra.mrb[0].mxu0 %v2171
    %v2239 = vpop.f32.mrb[0].mxu0
    %v2240 = vadd.f32 0.0, %v2239
    %v2241 = vpop.f32.mrb[0].mxu0
    %2242 = vdwg.mxu0
    %v2244 = vsel %vm637, %v1716, 0
    %2246 = vmatprep.subr.mxu0 0.0
    %2247 = vmatpush1.msra.mxu0 %v1949
    %2248 = vmatprep.subr.mxu0 0.0
    %2249 = vmatpush1.msra.mxu0 0.0
    %2250 = vmatprep.subr.mxu0 0.0
    %2251 = vmatpush1.msra.mxu0 0.0
    %2252 = vmatprep.subr.mxu0 0.0
    %2253 = vmatpush1.msra.mxu0 0.0
    %2254 = vmatprep.subr.mxu0 0.0
    %2255 = vmatpush1.msra.mxu0 0.0
    %2256 = vmatprep.subr.mxu0 0.0
    %2257 = vmatpush1.msra.mxu0 0.0
    %2258 = vmatprep.subr.mxu0 0.0
    %2259 = vmatpush1.msra.mxu0 0.0
    %2260 = vmatprep.subr.mxu0 0.0
    %2261 = vmatpush1.msra.mxu0 0.0
    %2262 = vmatprep.subr.mxu0 0.0
    %2263 = vmatpush1.msra.mxu0 0.0
    %2264 = vmatprep.subr.mxu0 0.0
    %2265 = vmatpush1.msra.mxu0 0.0
    %2266 = vmatprep.subr.mxu0 0.0
    %2267 = vmatpush1.msra.mxu0 0.0
    %2268 = vmatprep.subr.mxu0 0.0
    %2269 = vmatpush1.msra.mxu0 0.0
    %2270 = vmatprep.subr.mxu0 0.0
    %2271 = vmatpush1.msra.mxu0 0.0
    %2272 = vmatprep.subr.mxu0 0.0
    %2273 = vmatpush1.msra.mxu0 0.0
    %2274 = vmatprep.subr.mxu0 0.0
    %2275 = vmatpush1.msra.mxu0 0.0
    %2276 = vmatprep.subr.mxu0 0.0
    %2277 = vmatpush1.msra.mxu0 0.0
    %2278 = vmatprep.subr.mxu0 0.0
    %2279 = vmatpush1.msra.mxu0 0.0
    %2280 = vmatprep.subr.mxu0 0.0
    %2281 = vmatpush1.msra.mxu0 0.0
    %2282 = vmatprep.subr.mxu0 0.0
    %2283 = vmatpush1.msra.mxu0 0.0
    %2284 = vmatprep.subr.mxu0 0.0
    %2285 = vmatpush1.msra.mxu0 0.0
    %2286 = vmatprep.subr.mxu0 0.0
    %2287 = vmatpush1.msra.mxu0 0.0
    %2288 = vmatprep.subr.mxu0 0.0
    %2289 = vmatpush1.msra.mxu0 0.0
    %2290 = vmatprep.subr.mxu0 0.0
    %2291 = vmatpush1.msra.mxu0 0.0
    %2292 = vmatprep.subr.mxu0 0.0
    %2293 = vmatpush1.msra.mxu0 0.0
    %2294 = vmatprep.subr.mxu0 0.0
    %2295 = vmatpush1.msra.mxu0 0.0
    %2296 = vmatprep.subr.mxu0 0.0
    %2297 = vmatpush1.msra.mxu0 0.0
    %2298 = vmatprep.subr.mxu0 0.0
    %2299 = vmatpush1.msra.mxu0 0.0
    %2300 = vmatprep.subr.mxu0 0.0
    %2301 = vmatpush1.msra.mxu0 0.0
    %2302 = vmatprep.subr.mxu0 0.0
    %2303 = vmatpush1.msra.mxu0 0.0
    %2304 = vmatprep.subr.mxu0 0.0
    %2305 = vmatpush1.msra.mxu0 0.0
    %2306 = vmatprep.subr.mxu0 0.0
    %2307 = vmatpush1.msra.mxu0 0.0
    %2308 = vmatprep.subr.mxu0 0.0
    %2309 = vmatpush1.msra.mxu0 0.0
    %2310 = vmatprep.mubr.f32.mxu0 0.0
    %2311 = vmatmul.mubr.f32.gmra.mrb[0].mxu0 %v2244
    %v2312 = vpop.f32.mrb[0].mxu0
    %v2313 = vadd.f32 0.0, %v2312
    %v2314 = vpop.f32.mrb[0].mxu0
    %2315 = vdwg.mxu0
    %v2317 = vsel %vm637, %v1792, 0
    %2319 = vmatprep.subr.mxu0 0.0
    %2320 = vmatpush1.msra.mxu0 %v1949
    %2321 = vmatprep.subr.mxu0 0.0
    %2322 = vmatpush1.msra.mxu0 0.0
    %2323 = vmatprep.subr.mxu0 0.0
    %2324 = vmatpush1.msra.mxu0 0.0
    %2325 = vmatprep.subr.mxu0 0.0
    %2326 = vmatpush1.msra.mxu0 0.0
    %2327 = vmatprep.subr.mxu0 0.0
    %2328 = vmatpush1.msra.mxu0 0.0
    %2329 = vmatprep.subr.mxu0 0.0
    %2330 = vmatpush1.msra.mxu0 0.0
    %2331 = vmatprep.subr.mxu0 0.0
    %2332 = vmatpush1.msra.mxu0 0.0
    %2333 = vmatprep.subr.mxu0 0.0
    %2334 = vmatpush1.msra.mxu0 0.0
    %2335 = vmatprep.subr.mxu0 0.0
    %2336 = vmatpush1.msra.mxu0 0.0
    %2337 = vmatprep.subr.mxu0 0.0
    %2338 = vmatpush1.msra.mxu0 0.0
    %2339 = vmatprep.subr.mxu0 0.0
    %2340 = vmatpush1.msra.mxu0 0.0
    %2341 = vmatprep.subr.mxu0 0.0
    %2342 = vmatpush1.msra.mxu0 0.0
    %2343 = vmatprep.subr.mxu0 0.0
    %2344 = vmatpush1.msra.mxu0 0.0
    %2345 = vmatprep.subr.mxu0 0.0
    %2346 = vmatpush1.msra.mxu0 0.0
    %2347 = vmatprep.subr.mxu0 0.0
    %2348 = vmatpush1.msra.mxu0 0.0
    %2349 = vmatprep.subr.mxu0 0.0
    %2350 = vmatpush1.msra.mxu0 0.0
    %2351 = vmatprep.subr.mxu0 0.0
    %2352 = vmatpush1.msra.mxu0 0.0
    %2353 = vmatprep.subr.mxu0 0.0
    %2354 = vmatpush1.msra.mxu0 0.0
    %2355 = vmatprep.subr.mxu0 0.0
    %2356 = vmatpush1.msra.mxu0 0.0
    %2357 = vmatprep.subr.mxu0 0.0
    %2358 = vmatpush1.msra.mxu0 0.0
    %2359 = vmatprep.subr.mxu0 0.0
    %2360 = vmatpush1.msra.mxu0 0.0
    %2361 = vmatprep.subr.mxu0 0.0
    %2362 = vmatpush1.msra.mxu0 0.0
    %2363 = vmatprep.subr.mxu0 0.0
    %2364 = vmatpush1.msra.mxu0 0.0
    %2365 = vmatprep.subr.mxu0 0.0
    %2366 = vmatpush1.msra.mxu0 0.0
    %2367 = vmatprep.subr.mxu0 0.0
    %2368 = vmatpush1.msra.mxu0 0.0
    %2369 = vmatprep.subr.mxu0 0.0
    %2370 = vmatpush1.msra.mxu0 0.0
    %2371 = vmatprep.subr.mxu0 0.0
    %2372 = vmatpush1.msra.mxu0 0.0
    %2373 = vmatprep.subr.mxu0 0.0
    %2374 = vmatpush1.msra.mxu0 0.0
    %2375 = vmatprep.subr.mxu0 0.0
    %2376 = vmatpush1.msra.mxu0 0.0
    %2377 = vmatprep.subr.mxu0 0.0
    %2378 = vmatpush1.msra.mxu0 0.0
    %2379 = vmatprep.subr.mxu0 0.0
    %2380 = vmatpush1.msra.mxu0 0.0
    %2381 = vmatprep.subr.mxu0 0.0
    %2382 = vmatpush1.msra.mxu0 0.0
    %2383 = vmatprep.mubr.f32.mxu0 0.0
    %2384 = vmatmul.mubr.f32.gmra.mrb[0].mxu0 %v2317
    %v2385 = vpop.f32.mrb[0].mxu0
    %v2386 = vadd.f32 0.0, %v2385
    %v2387 = vpop.f32.mrb[0].mxu0
    %2388 = vdwg.mxu0
    %v2390 = vsel %vm637, %v1868, 0
    %2392 = vmatprep.subr.mxu0 0.0
    %2393 = vmatpush1.msra.mxu0 %v1950
    %2394 = vmatprep.subr.mxu0 0.0
    %2395 = vmatpush1.msra.mxu0 0.0
    %2396 = vmatprep.subr.mxu0 0.0
    %2397 = vmatpush1.msra.mxu0 0.0
    %2398 = vmatprep.subr.mxu0 0.0
    %2399 = vmatpush1.msra.mxu0 0.0
    %2400 = vmatprep.subr.mxu0 0.0
    %2401 = vmatpush1.msra.mxu0 0.0
    %2402 = vmatprep.subr.mxu0 0.0
    %2403 = vmatpush1.msra.mxu0 0.0
    %2404 = vmatprep.subr.mxu0 0.0
    %2405 = vmatpush1.msra.mxu0 0.0
    %2406 = vmatprep.subr.mxu0 0.0
    %2407 = vmatpush1.msra.mxu0 0.0
    %2408 = vmatprep.subr.mxu0 0.0
    %2409 = vmatpush1.msra.mxu0 0.0
    %2410 = vmatprep.subr.mxu0 0.0
    %2411 = vmatpush1.msra.mxu0 0.0
    %2412 = vmatprep.subr.mxu0 0.0
    %2413 = vmatpush1.msra.mxu0 0.0
    %2414 = vmatprep.subr.mxu0 0.0
    %2415 = vmatpush1.msra.mxu0 0.0
    %2416 = vmatprep.subr.mxu0 0.0
    %2417 = vmatpush1.msra.mxu0 0.0
    %2418 = vmatprep.subr.mxu0 0.0
    %2419 = vmatpush1.msra.mxu0 0.0
    %2420 = vmatprep.subr.mxu0 0.0
    %2421 = vmatpush1.msra.mxu0 0.0
    %2422 = vmatprep.subr.mxu0 0.0
    %2423 = vmatpush1.msra.mxu0 0.0
    %2424 = vmatprep.subr.mxu0 0.0
    %2425 = vmatpush1.msra.mxu0 0.0
    %2426 = vmatprep.subr.mxu0 0.0
    %2427 = vmatpush1.msra.mxu0 0.0
    %2428 = vmatprep.subr.mxu0 0.0
    %2429 = vmatpush1.msra.mxu0 0.0
    %2430 = vmatprep.subr.mxu0 0.0
    %2431 = vmatpush1.msra.mxu0 0.0
    %2432 = vmatprep.subr.mxu0 0.0
    %2433 = vmatpush1.msra.mxu0 0.0
    %2434 = vmatprep.subr.mxu0 0.0
    %2435 = vmatpush1.msra.mxu0 0.0
    %2436 = vmatprep.subr.mxu0 0.0
    %2437 = vmatpush1.msra.mxu0 0.0
    %2438 = vmatprep.subr.mxu0 0.0
    %2439 = vmatpush1.msra.mxu0 0.0
    %2440 = vmatprep.subr.mxu0 0.0
    %2441 = vmatpush1.msra.mxu0 0.0
    %2442 = vmatprep.subr.mxu0 0.0
    %2443 = vmatpush1.msra.mxu0 0.0
    %2444 = vmatprep.subr.mxu0 0.0
    %2445 = vmatpush1.msra.mxu0 0.0
    %2446 = vmatprep.subr.mxu0 0.0
    %2447 = vmatpush1.msra.mxu0 0.0
    %2448 = vmatprep.subr.mxu0 0.0
    %2449 = vmatpush1.msra.mxu0 0.0
    %2450 = vmatprep.subr.mxu0 0.0
    %2451 = vmatpush1.msra.mxu0 0.0
    %2452 = vmatprep.subr.mxu0 0.0
    %2453 = vmatpush1.msra.mxu0 0.0
    %2454 = vmatprep.subr.mxu0 0.0
    %2455 = vmatpush1.msra.mxu0 0.0
    %2456 = vmatprep.mubr.f32.mxu0 0.0
    %2457 = vmatmul.mubr.f32.gmra.mrb[0].mxu0 %v2390
    %v2458 = vpop.f32.mrb[0].mxu0
    %v2459 = vadd.f32 0.0, %v2458
    %v2460 = vpop.f32.mrb[0].mxu0
    %2461 = vdwg.mxu0
    %v2463 = vsel %vm637, %v1944, 0
    %2465 = vmatprep.subr.mxu0 0.0
    %2466 = vmatpush1.msra.mxu0 %v1950
    %2467 = vmatprep.subr.mxu0 0.0
    %2468 = vmatpush1.msra.mxu0 0.0
    %2469 = vmatprep.subr.mxu0 0.0
    %2470 = vmatpush1.msra.mxu0 0.0
    %2471 = vmatprep.subr.mxu0 0.0
    %2472 = vmatpush1.msra.mxu0 0.0
    %2473 = vmatprep.subr.mxu0 0.0
    %2474 = vmatpush1.msra.mxu0 0.0
    %2475 = vmatprep.subr.mxu0 0.0
    %2476 = vmatpush1.msra.mxu0 0.0
    %2477 = vmatprep.subr.mxu0 0.0
    %2478 = vmatpush1.msra.mxu0 0.0
    %2479 = vmatprep.subr.mxu0 0.0
    %2480 = vmatpush1.msra.mxu0 0.0
    %2481 = vmatprep.subr.mxu0 0.0
    %2482 = vmatpush1.msra.mxu0 0.0
    %2483 = vmatprep.subr.mxu0 0.0
    %2484 = vmatpush1.msra.mxu0 0.0
    %2485 = vmatprep.subr.mxu0 0.0
    %2486 = vmatpush1.msra.mxu0 0.0
    %2487 = vmatprep.subr.mxu0 0.0
    %2488 = vmatpush1.msra.mxu0 0.0
    %2489 = vmatprep.subr.mxu0 0.0
    %2490 = vmatpush1.msra.mxu0 0.0
    %2491 = vmatprep.subr.mxu0 0.0
    %2492 = vmatpush1.msra.mxu0 0.0
    %2493 = vmatprep.subr.mxu0 0.0
    %2494 = vmatpush1.msra.mxu0 0.0
    %2495 = vmatprep.subr.mxu0 0.0
    %2496 = vmatpush1.msra.mxu0 0.0
    %2497 = vmatprep.subr.mxu0 0.0
    %2498 = vmatpush1.msra.mxu0 0.0
    %2499 = vmatprep.subr.mxu0 0.0
    %2500 = vmatpush1.msra.mxu0 0.0
    %2501 = vmatprep.subr.mxu0 0.0
    %2502 = vmatpush1.msra.mxu0 0.0
    %2503 = vmatprep.subr.mxu0 0.0
    %2504 = vmatpush1.msra.mxu0 0.0
    %2505 = vmatprep.subr.mxu0 0.0
    %2506 = vmatpush1.msra.mxu0 0.0
    %2507 = vmatprep.subr.mxu0 0.0
    %2508 = vmatpush1.msra.mxu0 0.0
    %2509 = vmatprep.subr.mxu0 0.0
    %2510 = vmatpush1.msra.mxu0 0.0
    %2511 = vmatprep.subr.mxu0 0.0
    %2512 = vmatpush1.msra.mxu0 0.0
    %2513 = vmatprep.subr.mxu0 0.0
    %2514 = vmatpush1.msra.mxu0 0.0
    %2515 = vmatprep.subr.mxu0 0.0
    %2516 = vmatpush1.msra.mxu0 0.0
    %2517 = vmatprep.subr.mxu0 0.0
    %2518 = vmatpush1.msra.mxu0 0.0
    %2519 = vmatprep.subr.mxu0 0.0
    %2520 = vmatpush1.msra.mxu0 0.0
    %2521 = vmatprep.subr.mxu0 0.0
    %2522 = vmatpush1.msra.mxu0 0.0
    %2523 = vmatprep.subr.mxu0 0.0
    %2524 = vmatpush1.msra.mxu0 0.0
    %2525 = vmatprep.subr.mxu0 0.0
    %2526 = vmatpush1.msra.mxu0 0.0
    %2527 = vmatprep.subr.mxu0 0.0
    %2528 = vmatpush1.msra.mxu0 0.0
    %2529 = vmatprep.mubr.f32.mxu0 0.0
    %2530 = vmatmul.mubr.f32.gmra.mrb[0].mxu0 %v2463
    %v2531 = vpop.f32.mrb[0].mxu0
    %v2532 = vadd.f32 0.0, %v2531
    %v2533 = vpop.f32.mrb[0].mxu0
    %2534 = vdwg.mxu0
    %v2535 = vsel %vm67, %v2021, 0.0
    %v2536 = vsel %vm67, %v2167, 0.0
    %v2537 = vadd.f32 %v2535, %v2536
    %v2538 = vsel %vm67, %v2313, 0.0
    %v2539 = vadd.f32 %v2537, %v2538
    %v2540 = vsel %vm67, %v2459, 0.0
    %v2541 = vadd.f32 %v2539, %v2540
    %v2542 = vsel %vm67, %v2094, 0.0
    %v2543 = vsel %vm67, %v2240, 0.0
    %v2544 = vadd.f32 %v2542, %v2543
    %v2545 = vsel %vm67, %v2386, 0.0
    %v2546 = vadd.f32 %v2544, %v2545
    %v2547 = vsel %vm67, %v2532, 0.0
    %v2548 = vadd.f32 %v2546, %v2547
    %v2549 = vld [vmem:[%s4] sm:$0x1]
    %v2551 = vlaneseq
    %v2552 = vshrl.u32 %v2551, 7
    %v2553 = vsub.s32 0, %v2552
    %v2554 = vrot.slane %v2549, %v2553
    %v2556 = vadd.f32 %v2541, %v2554
    %v2557 = vadd.f32 %v2548, %v2554
    %2558 = vst.msk [vmem:[#allocation2] sm:$0xff] %vm67, %v2556
    %2559 = vst.msk [vmem:[#allocation2 + $0x8] sm:$0xff] %vm67, %v2557
    // Predicated region
    $region22: #{tpu_custom_call.1} parent=1 // pred_check
      _
    $region23: #{tpu_custom_call.1} parent=1 // pred_check_branch
      %2561 = sbr.rel (0) target = $region25
    $region24: #{tpu_custom_call.1} parent=1 // pred_region
      %s2563 = ssub.s32 256, 256
      %2564 = vsyncadd [#allocation3], %s2563
      %s2565 = sshll.u32 [#allocation2], 4
      %s2566 = int_to_ptr.vmem [resolvable:$true] %s2565
      %2571 = dma.vmem_to_hbm [thread:$0]  %s2566, 256, %s5, [#allocation3], 128, 128, 8
    $region25: #{tpu_custom_call.1} parent=1 // pred_fallthru
      _
    // Predicated region
    $region26: #{tpu_custom_call.1} parent=1 // pred_check
      _
    $region27: #{tpu_custom_call.1} parent=1 // pred_check_branch
      %2573 = sbr.rel (0) target = $region29
    $region28: #{tpu_custom_call.1} parent=1 // pred_region
      %2574 = dma.done [#allocation3], 256
    $region29: #{tpu_custom_call.1} parent=1 // pred_fallthru
      _
    %2575 = vsyncpa [#allocation3], 1

</llo_original>
